<compile_context>
chip_gen: v7x
topology: tpu7x:2x2x1
jax: 0.10.0
libtpu: 0.0.40
codegen_flags: <defaults>
</compile_context>

<pallas_src>
import functools
import math

import jax
import jax.numpy as jnp
from jax.experimental import pallas as pl
from jax.experimental.pallas import tpu as pltpu


def _round_up(a, b):
    return (a + b - 1) // b * b


def _hw_info():
    """(vmem_capacity_bytes, multi_tensorcore) with conservative fallbacks."""
    vmem_cap = None
    try:
        vmem_cap = int(pltpu.get_tpu_info().vmem_capacity_bytes)
    except Exception:
        pass
    kind = ""
    try:
        kind = str(jax.devices()[0].device_kind).lower()
    except Exception:
        pass
    # Chips where a "parallel" grid axis is actually sharded across more than
    # one TensorCore (megacore v4/v5p, dual-TC v7x).  v5e/v6e have a single TC.
    multi_tc = any(tag in kind for tag in ("v4", "v5p", "v7", "7x"))
    if not multi_tc and vmem_cap is not None and vmem_cap <= 64 * 1024 * 1024:
        multi_tc = True  # 64 MiB per-core VMEM => v7x-class part
    if vmem_cap is None:
        vmem_cap = 64 * 1024 * 1024  # conservative default
    return vmem_cap, multi_tc


def _choose_pack(M, C, max_c2=1024):
    """Pick k so x (M,C) -> (M/k, k*C) is lane-dense; prefer k*C % 128 == 0."""
    if C % 128 == 0:
        return 1
    k0 = 128 // math.gcd(C, 128)          # smallest k making k*C a multiple of 128
    k = k0
    while k * C <= max_c2 and k <= M:
        if M % k == 0:
            return k
        k += k0
    # Fallback: largest k <= 128//C that divides M (C2 may stay below 128).
    for cand in range(min(M, max(1, 128 // C)), 0, -1):
        if M % cand == 0:
            return cand
    return 1


# ----------------------------- kernels --------------------------------------


def _stats_kernel(x_ref, sum_ref, sq_ref, *, tm, tpc, ntiles, m_valid, has_tail):
    """Accumulate per-lane sum / sum-of-squares over row tiles."""
    c = pl.program_id(0)
    j = pl.program_id(1)
    tile = c * tpc + j

    @pl.when(j == 0)
    def _():
        sum_ref[...] = jnp.zeros_like(sum_ref)
        sq_ref[...] = jnp.zeros_like(sq_ref)

    def _accum(x):
        sum_ref[...] += jnp.sum(x, axis=0, keepdims=True)[None]   # (1, 1, C2)
        sq_ref[...] += jnp.sum(x * x, axis=0, keepdims=True)[None]

    if has_tail:
        # Interior tiles: unmasked fast path (stays on the HBM roofline).
        @pl.when(tile < ntiles - 1)
        def _():
            _accum(x_ref[...].astype(jnp.float32))

        # Tail tile only: zero rows past the true end.
        @pl.when(tile == ntiles - 1)
        def _():
            x = x_ref[...].astype(jnp.float32)
            rows = jax.lax.broadcasted_iota(jnp.int32, x.shape, 0) + tile * tm
            _accum(jnp.where(rows < m_valid, x, 0.0))
    else:
        # Clamped out-of-range duplicate tiles (odd tile count on the dual-TC
        # split) contribute nothing: skip their compute entirely.
        @pl.when(tile < ntiles)
        def _():
            _accum(x_ref[...].astype(jnp.float32))


def _norm_kernel(x_ref, scale_ref, shift_ref, o_ref):
    """y = x * scale + shift (single fused multiply-add per element)."""
    x = x_ref[...].astype(jnp.float32)
    o_ref[...] = (x * scale_ref[...] + shift_ref[...]).astype(o_ref.dtype)


def _fused_kernel(*refs, m_total, eps, need_fold):
    """Single-pass BN: stats + scale/shift + normalize with x resident in VMEM."""
    if need_fold:
        x_ref, g_ref, b_ref, fold_ref, o_ref = refs
    else:
        x_ref, g_ref, b_ref, o_ref = refs
    x = x_ref[...].astype(jnp.float32)                  # (M2, C2)
    s = jnp.sum(x, axis=0, keepdims=True)               # (1, C2)
    q = jnp.sum(x * x, axis=0, keepdims=True)           # (1, C2)
    if need_fold:
        # fold[i, j] = (i % C == j % C): one tiny MXU matmul both folds the k
        # lane groups and broadcasts the totals back to every group's lanes.
        fold = fold_ref[...]
        s = jnp.dot(s, fold, preferred_element_type=jnp.float32,
                    precision=jax.lax.Precision.HIGHEST)
        q = jnp.dot(q, fold, preferred_element_type=jnp.float32,
                    precision=jax.lax.Precision.HIGHEST)
    inv_m = jnp.float32(1.0 / m_total)
    mean = s * inv_m
    var = jnp.maximum(q * inv_m - mean * mean, 0.0)      # biased var, clamp >= 0
    scale = g_ref[...] * jax.lax.rsqrt(var + jnp.float32(eps))
    shift = b_ref[...] - mean * scale
    o_ref[...] = (x * scale + shift).astype(o_ref.dtype)


# ----------------------------- wrapper ---------------------------------------


def bn_lastdim(x, gamma, beta, *, eps=1e-5, max_block_bytes=None, fuse=None):
    """BatchNorm1d over the last dim of x (shape (B, L, C)), training-mode stats."""
    assert x.ndim == 3, "expected (B, L, C)"
    B, L, C = x.shape
    M = B * L

    vmem_cap, multi_tc = _hw_info()
    itemsize = jnp.dtype(x.dtype).itemsize
    sub = 8 * max(1, 4 // itemsize)          # sublane multiple: 8 f32 / 16 bf16 / 32 int8

    # Lane-dense packing: (M, C) -> (M/k, k*C), k chosen so k*C % 128 == 0 if possible.
    k = _choose_pack(M, C)
    M2, C2 = M // k, k * C
    x2 = x.reshape(M2, C2)

    gamma_f = gamma.astype(jnp.float32)
    beta_f = beta.astype(jnp.float32)

    # ---- Fused single-pass path when the packed tensor fits comfortably in VMEM.
    if fuse is None:
        fuse = (M2 * C2 * 4) <= vmem_cap // 10
    if fuse:
        gamma2 = jnp.tile(gamma_f, k).reshape(1, C2)
        beta2 = jnp.tile(beta_f, k).reshape(1, C2)
        need_fold = k > 1
        inputs = [x2, gamma2, beta2]
        in_specs = [
            pl.BlockSpec((M2, C2), lambda i: (0, 0)),
            pl.BlockSpec((1, C2), lambda i: (0, 0)),
            pl.BlockSpec((1, C2), lambda i: (0, 0)),
        ]
        if need_fold:
            lane_feat = jnp.arange(C2, dtype=jnp.int32) % C
            fold = (lane_feat[:, None] == lane_feat[None, :]).astype(jnp.float32)
            inputs.append(fold)
            in_specs.append(pl.BlockSpec((C2, C2), lambda i: (0, 0)))
        y2 = pl.pallas_call(
            functools.partial(_fused_kernel, m_total=M, eps=eps, need_fold=need_fold),
            out_shape=jax.ShapeDtypeStruct((M2, C2), x.dtype),
            grid=(1,),
            in_specs=in_specs,
            out_specs=pl.BlockSpec((M2, C2), lambda i: (0, 0)),
            compiler_params=pltpu.CompilerParams(
                dimension_semantics=("arbitrary",),
                vmem_limit_bytes=int(min(vmem_cap * 7 // 8, 112 * 1024 * 1024))),
        )(*inputs)
        return y2.reshape(B, L, C)

    # ---- Two-pass streaming path.
    vmem_limit = int(min(vmem_cap * 3 // 4, 96 * 1024 * 1024))
    if max_block_bytes is None:
        # Larger blocks amortize the ~0.35us/step cost; v7x (64 MiB VMEM) gets
        # 6 MiB norm blocks, 128-MiB parts (v5e/v6e) get 12 MiB.  Stats blocks
        # are kept smaller to leave room for the f32 reduce temps of bf16 tiles.
        if vmem_cap <= 64 * 1024 * 1024:
            norm_block_bytes, stats_block_bytes = 6 * 1024 * 1024, 4 * 1024 * 1024
        else:
            norm_block_bytes, stats_block_bytes = 12 * 1024 * 1024, 8 * 1024 * 1024
    else:
        norm_block_bytes = stats_block_bytes = max_block_bytes

    def _tile_rows(block_bytes):
        t = max(1, block_bytes // (C2 * itemsize))
        return _round_up(min(t, M2), sub)

    # Pass 1: per-feature partial sums, accumulated in resident (1, 1, C2) blocks.
    tm_s = _tile_rows(stats_block_bytes)
    ntiles_s = -(-M2 // tm_s)
    nc = 2 if (multi_tc and ntiles_s >= 2) else 1   # split only on dual-TC parts
    tpc = -(-ntiles_s // nc)
    has_tail_s = (M2 % tm_s) != 0

    sum_p, sq_p = pl.pallas_call(
        functools.partial(_stats_kernel, tm=tm_s, tpc=tpc, ntiles=ntiles_s,
                          m_valid=M2, has_tail=has_tail_s),
        out_shape=(
            jax.ShapeDtypeStruct((nc, 1, C2), jnp.float32),
            jax.ShapeDtypeStruct((nc, 1, C2), jnp.float32),
        ),
        grid=(nc, tpc),
        in_specs=[
            # Clamp so a trailing out-of-range grid step re-reads the last valid
            # tile (its compute is skipped in-kernel).
            pl.BlockSpec((tm_s, C2),
                         lambda c, j: (jnp.minimum(c * tpc + j, ntiles_s - 1), 0)),
        ],
        out_specs=(
            pl.BlockSpec((1, 1, C2), lambda c, j: (c, 0, 0)),
            pl.BlockSpec((1, 1, C2), lambda c, j: (c, 0, 0)),
        ),
        compiler_params=pltpu.CompilerParams(
            dimension_semantics=("parallel", "arbitrary"),
            vmem_limit_bytes=vmem_limit),
    )(x2)

    # Tiny jnp epilogue: fold core + lane-group partials, build scale/shift once.
    s = jnp.sum(sum_p, axis=(0, 1)).reshape(k, C).sum(axis=0)     # (C,)
    ss = jnp.sum(sq_p, axis=(0, 1)).reshape(k, C).sum(axis=0)     # (C,)
    mean = s / M
    var = jnp.maximum(ss / M - mean * mean, 0.0)                  # biased var, clamp >= 0
    rstd = jax.lax.rsqrt(var + jnp.float32(eps))
    scale = gamma_f * rstd
    shift = beta_f - mean * scale
    scale2 = jnp.tile(scale, k).reshape(1, C2)
    shift2 = jnp.tile(shift, k).reshape(1, C2)

    # Pass 2: elementwise FMA, row-tiled, megacore-parallel.  Output written at
    # its true (M2, C2) shape (no padding copy, no output slice copy).
    tm_n = _tile_rows(norm_block_bytes)
    ntiles_n = -(-M2 // tm_n)
    y2 = pl.pallas_call(
        _norm_kernel,
        out_shape=jax.ShapeDtypeStruct((M2, C2), x.dtype),
        grid=(ntiles_n,),
        in_specs=[
            pl.BlockSpec((tm_n, C2), lambda i: (i, 0)),
            pl.BlockSpec((1, C2), lambda i: (0, 0)),
            pl.BlockSpec((1, C2), lambda i: (0, 0)),
        ],
        out_specs=pl.BlockSpec((tm_n, C2), lambda i: (i, 0)),
        compiler_params=pltpu.CompilerParams(
            dimension_semantics=("parallel",),
            vmem_limit_bytes=vmem_limit),
    )(x2, scale2, shift2)

    return y2.reshape(B, L, C)


# ----------------------------- reference & tests -----------------------------


def bn_lastdim_ref(x, gamma, beta, eps=1e-5):
    xf = x.astype(jnp.float32)
    mean = jnp.mean(xf, axis=(0, 1), keepdims=True)
    var = jnp.mean((xf - mean) ** 2, axis=(0, 1), keepdims=True)   # biased (BN training)
    return (xf - mean) * jax.lax.rsqrt(var + eps) * gamma + beta


def _check(B, L, C, dtype, tol, **kw):
    kx, kg, kb = jax.random.split(jax.random.PRNGKey(0), 3)
    x = jax.random.normal(kx, (B, L, C), dtype=jnp.float32).astype(dtype)
    gamma = 1.0 + 0.1 * jax.random.normal(kg, (C,), dtype=jnp.float32)
    beta = 0.1 * jax.random.normal(kb, (C,), dtype=jnp.float32)

    y = jax.block_until_ready(bn_lastdim(x, gamma, beta, **kw))
    assert y.shape == (B, L, C) and y.dtype == dtype

    yr = bn_lastdim_ref(x, gamma, beta)
    err = float(jnp.max(jnp.abs(y.astype(jnp.float32) - yr)))
    assert err < tol, f"mismatch {err} for shape {(B, L, C)} dtype {dtype}"


if __name__ == "__main__":
    # TODO(synk): nn.BatchNorm1d also updates running_mean/running_var buffers in
    # training mode; that stateful side effect is not part of the returned tensor.

    # 1) Module-natural small shape (B=2, L=8, C=32): fused single-pass path,
    #    lane-packed to C2=128 with the in-kernel group-fold matmul.
    _check(2, 8, 32, jnp.float32, 5e-4)
    # 2) Irregular small shape where no 128-multiple packing divides M: fused
    #    path with the fallback (C2 < 128) packing.
    _check(3, 7, 24, jnp.float32, 5e-4)
    # 3) Multi-tile two-pass f32 path (forced small blocks): tail-tile-only
    #    masking and, on dual-TC parts, the 2-way stats split.
    _check(4, 1000, 64, jnp.float32, 5e-4, max_block_bytes=64 * 1024, fuse=False)
    # 4) bf16, C multiple of 128, odd tile count: dtype-aware sublanes and the
    #    skipped clamped out-of-range stats tile on dual-TC parts.
    _check(2, 300, 256, jnp.bfloat16, 1e-1, max_block_bytes=64 * 1024, fuse=False)

    print("KERNEL_OK")
</pallas_src>

<mosaic_0001>
module attributes {stable_mosaic.version = 11 : i64} {
  func.func @_fused_kernel(%arg0: i32, %arg1: memref<4x128xf32, #tpu.memory_space<vmem>>, %arg2: memref<1x128xf32, #tpu.memory_space<vmem>>, %arg3: memref<1x128xf32, #tpu.memory_space<vmem>>, %arg4: memref<128x128xf32, #tpu.memory_space<vmem>>, %arg5: memref<4x128xf32, #tpu.memory_space<vmem>>) attributes {dimension_semantics = [#tpu.dimension_semantics<arbitrary>], iteration_bounds = array<i64: 1>, scalar_prefetch = 0 : i64, scratch_operands = 0 : i64, tpu.core_type = #tpu.core_type<tc>, window_params = [{pipeline_mode = #tpu.pipeline_mode<synchronous>, transform_indices = @transform_0, window_bounds = array<i64: 4, 128>}, {pipeline_mode = #tpu.pipeline_mode<synchronous>, transform_indices = @transform_1, window_bounds = array<i64: 1, 128>}, {pipeline_mode = #tpu.pipeline_mode<synchronous>, transform_indices = @transform_2, window_bounds = array<i64: 1, 128>}, {pipeline_mode = #tpu.pipeline_mode<synchronous>, transform_indices = @transform_3, window_bounds = array<i64: 128, 128>}, {pipeline_mode = #tpu.pipeline_mode<synchronous>, transform_indices = @transform_4, window_bounds = array<i64: 4, 128>}]} {
    %c0 = arith.constant 0 : index
    %c0_0 = arith.constant 0 : index
    %0 = vector.load %arg1[%c0, %c0_0] : memref<4x128xf32, #tpu.memory_space<vmem>>, vector<4x128xf32>
    %cst = arith.constant dense<0.000000e+00> : vector<128xf32>
    %1 = vector.multi_reduction <add>, %0, %cst [0] : vector<4x128xf32> to vector<128xf32>
    %2 = vector.shape_cast %1 : vector<128xf32> to vector<1x128xf32>
    %3 = arith.mulf %0, %0 : vector<4x128xf32>
    %cst_1 = arith.constant dense<0.000000e+00> : vector<128xf32>
    %4 = vector.multi_reduction <add>, %3, %cst_1 [0] : vector<4x128xf32> to vector<128xf32>
    %5 = vector.shape_cast %4 : vector<128xf32> to vector<1x128xf32>
    %c0_2 = arith.constant 0 : index
    %c0_3 = arith.constant 0 : index
    %6 = vector.load %arg4[%c0_2, %c0_3] : memref<128x128xf32, #tpu.memory_space<vmem>>, vector<128x128xf32>
    %cst_4 = arith.constant dense<0.000000e+00> : vector<1x128xf32>
    %7 = tpu.matmul %2, %6, %cst_4 {dimension_numbers = #tpu.dot_dimension_numbers<[1], [0], [0], [1], [0, 0, 1, 1], [], []>, precision = #tpu.contract_precision<fp32>} : vector<1x128xf32>, vector<128x128xf32>, vector<1x128xf32> -> vector<1x128xf32>
    %cst_5 = arith.constant dense<0.000000e+00> : vector<1x128xf32>
    %8 = tpu.matmul %5, %6, %cst_5 {dimension_numbers = #tpu.dot_dimension_numbers<[1], [0], [0], [1], [0, 0, 1, 1], [], []>, precision = #tpu.contract_precision<fp32>} : vector<1x128xf32>, vector<128x128xf32>, vector<1x128xf32> -> vector<1x128xf32>
    %cst_6 = arith.constant 6.250000e-02 : f32
    %9 = vector.broadcast %cst_6 : f32 to vector<1x128xf32>
    %10 = arith.mulf %7, %9 : vector<1x128xf32>
    %cst_7 = arith.constant 6.250000e-02 : f32
    %11 = vector.broadcast %cst_7 : f32 to vector<1x128xf32>
    %12 = arith.mulf %8, %11 : vector<1x128xf32>
    %13 = arith.mulf %10, %10 : vector<1x128xf32>
    %14 = arith.subf %12, %13 : vector<1x128xf32>
    %cst_8 = arith.constant 0.000000e+00 : f32
    %15 = vector.broadcast %cst_8 : f32 to vector<1x128xf32>
    %16 = arith.maximumf %14, %15 : vector<1x128xf32>
    %c0_9 = arith.constant 0 : index
    %c0_10 = arith.constant 0 : index
    %17 = vector.load %arg2[%c0_9, %c0_10] : memref<1x128xf32, #tpu.memory_space<vmem>>, vector<1x128xf32>
    %cst_11 = arith.constant 9.99999974E-6 : f32
    %18 = vector.broadcast %cst_11 : f32 to vector<1x128xf32>
    %19 = arith.addf %16, %18 : vector<1x128xf32>
    %20 = math.rsqrt %19 : vector<1x128xf32>
    %21 = arith.mulf %17, %20 : vector<1x128xf32>
    %c0_12 = arith.constant 0 : index
    %c0_13 = arith.constant 0 : index
    %22 = vector.load %arg3[%c0_12, %c0_13] : memref<1x128xf32, #tpu.memory_space<vmem>>, vector<1x128xf32>
    %23 = arith.mulf %10, %21 : vector<1x128xf32>
    %24 = arith.subf %22, %23 : vector<1x128xf32>
    %25 = vector.broadcast %21 : vector<1x128xf32> to vector<4x128xf32>
    %26 = arith.mulf %0, %25 : vector<4x128xf32>
    %27 = vector.broadcast %24 : vector<1x128xf32> to vector<4x128xf32>
    %28 = arith.addf %26, %27 : vector<4x128xf32>
    %c0_14 = arith.constant 0 : index
    %c0_15 = arith.constant 0 : index
    %29 = vector.load %arg5[%c0_14, %c0_15] : memref<4x128xf32, #tpu.memory_space<vmem>>, vector<4x128xf32>
    tpu.vector_store %arg5[%c0_14, %c0_15], %28 {strides = array<i32>} : memref<4x128xf32, #tpu.memory_space<vmem>>, vector<4x128xf32>,
    return
  }
  func.func @transform_0(%arg0: i32) -> (i32, i32) {
    %c0_i32 = arith.constant 0 : i32
    %c0_i32_0 = arith.constant 0 : i32
    %c0_i32_1 = arith.constant 0 : i32
    return %c0_i32, %c0_i32_0 : i32, i32
  }
  func.func @transform_1(%arg0: i32) -> (i32, i32) {
    %c0_i32 = arith.constant 0 : i32
    %c0_i32_0 = arith.constant 0 : i32
    %c0_i32_1 = arith.constant 0 : i32
    return %c0_i32, %c0_i32_0 : i32, i32
  }
  func.func @transform_2(%arg0: i32) -> (i32, i32) {
    %c0_i32 = arith.constant 0 : i32
    %c0_i32_0 = arith.constant 0 : i32
    %c0_i32_1 = arith.constant 0 : i32
    return %c0_i32, %c0_i32_0 : i32, i32
  }
  func.func @transform_3(%arg0: i32) -> (i32, i32) {
    %c0_i32 = arith.constant 0 : i32
    %c0_i32_0 = arith.constant 0 : i32
    %c0_i32_1 = arith.constant 0 : i32
    return %c0_i32, %c0_i32_0 : i32, i32
  }
  func.func @transform_4(%arg0: i32) -> (i32, i32) {
    %c0_i32 = arith.constant 0 : i32
    %c0_i32_0 = arith.constant 0 : i32
    %c0_i32_1 = arith.constant 0 : i32
    return %c0_i32, %c0_i32_0 : i32, i32
  }
}

</mosaic_0001>

<llo_original>
// kernel: tpu_custom_call.1
$region0: #{tpu_custom_call.1}
  #allocation0 [shape = 'u32[]', space=smem, size = 0x4, offset = 0x4, fixed_abs, tag = 'smem constant byte address 0x4 - core index']
  #allocation1 [shape = 'u32[144,128]{1,0:T(1,128)}', space=vmem, size = 0x12000, scoped, tag = 'internal scratch']
  %s0 = inlined_call_operand.hbm [shape: f32[4,128], index: 0, kind: input, shape index: {}]
  %s1 = inlined_call_operand.vmem [shape: f32[1,128], index: 1, kind: input, shape index: {}]
  %s2 = inlined_call_operand.vmem [shape: f32[1,128], index: 2, kind: input, shape index: {}]
  %s3 = inlined_call_operand.hbm [shape: f32[128,128], index: 3, kind: input, shape index: {}]
  %s4 = inlined_call_operand.hbm [shape: f32[4,128], index: 4, kind: output, shape index: {}]
  %s5 = sld [smem:[#allocation0]]
  $region34: #{tpu_custom_call.1} parent=0
    _
  %s7 = ssub.s32 1, %s5
  %s8 = scalar_select 0, %s7, %s5
  $region1: #{tpu_custom_call.1} parent=0
    #allocation2 [shape = 'u8[2048]{0}', space=vmem, size = 0x800, scoped, tag = 'input window, operand 0, single buffered']
    #allocation3 [shape = 's32[1]{0}', space=sflag, size = 0x4, scoped, tag = 'scoped memory for tpu_custom_call.1']
    #allocation4 [shape = 's32[1]{0}', space=sflag, size = 0x4, scoped, tag = 'scoped memory for tpu_custom_call.1']
    #allocation5 [shape = 'u8[65536]{0}', space=vmem, size = 0x10000, scoped, tag = 'input window, operand 3, single buffered']
    #allocation6 [shape = 's32[1]{0}', space=sflag, size = 0x4, scoped, tag = 'scoped memory for tpu_custom_call.1']
    #allocation7 [shape = 'u8[2048]{0}', space=vmem, size = 0x800, scoped, tag = 'output window, operand 0, single buffered']
    %9 = vsyncpa [#allocation3], 0
    %10 = vsyncpa [#allocation6], 0
    %11 = vsyncpa [#allocation4], 0
    // Predicated region
    $region2: #{tpu_custom_call.1} parent=1 // pred_check
      _
    $region3: #{tpu_custom_call.1} parent=1 // pred_check_branch
      %13 = sbr.rel (0) target = $region5
    $region4: #{tpu_custom_call.1} parent=1 // pred_region
      %s15 = ssub.s32 64, 64
      %16 = vsyncadd [#allocation3], %s15
      %s18 = sshll.u32 [#allocation2], 4
      %s19 = int_to_ptr.vmem [resolvable:$true] %s18
      %21 = dma.hbm_to_vmem [thread:$0]  %s0, 64, %s19, [#allocation3]
    $region5: #{tpu_custom_call.1} parent=1 // pred_fallthru
      _
    // Predicated region
    $region6: #{tpu_custom_call.1} parent=1 // pred_check
      _
    $region7: #{tpu_custom_call.1} parent=1 // pred_check_branch
      %23 = sbr.rel (0) target = $region9
    $region8: #{tpu_custom_call.1} parent=1 // pred_region
      _
    $region9: #{tpu_custom_call.1} parent=1 // pred_fallthru
      _
    // Predicated region
    $region10: #{tpu_custom_call.1} parent=1 // pred_check
      _
    $region11: #{tpu_custom_call.1} parent=1 // pred_check_branch
      %25 = sbr.rel (0) target = $region13
    $region12: #{tpu_custom_call.1} parent=1 // pred_region
      _
    $region13: #{tpu_custom_call.1} parent=1 // pred_fallthru
      _
    // Predicated region
    $region14: #{tpu_custom_call.1} parent=1 // pred_check
      _
    $region15: #{tpu_custom_call.1} parent=1 // pred_check_branch
      %27 = sbr.rel (0) target = $region17
    $region16: #{tpu_custom_call.1} parent=1 // pred_region
      %s29 = ssub.s32 2048, 2048
      %30 = vsyncadd [#allocation6], %s29
      %s31 = sshll.u32 [#allocation5], 4
      %s32 = int_to_ptr.vmem [resolvable:$true] %s31
      %37 = dma.hbm_to_vmem [thread:$0]  %s3, 2048, %s32, [#allocation6], 128, 128, 8
    $region17: #{tpu_custom_call.1} parent=1 // pred_fallthru
      _
    // Predicated region
    $region18: #{tpu_custom_call.1} parent=1 // pred_check
      _
    $region19: #{tpu_custom_call.1} parent=1 // pred_check_branch
      %39 = sbr.rel (0) target = $region21
    $region20: #{tpu_custom_call.1} parent=1 // pred_region
      %40 = dma.done [#allocation3], 64
    $region21: #{tpu_custom_call.1} parent=1 // pred_fallthru
      _
    // Predicated region
    $region22: #{tpu_custom_call.1} parent=1 // pred_check
      _
    $region23: #{tpu_custom_call.1} parent=1 // pred_check_branch
      %42 = sbr.rel (0) target = $region25
    $region24: #{tpu_custom_call.1} parent=1 // pred_region
      %43 = dma.done [#allocation6], 2048
    $region25: #{tpu_custom_call.1} parent=1 // pred_fallthru
      _
    %v44 = vld [vmem:[#allocation2] sm:$0xf]
    %vm45 = vcmask 1043456
    %v46 = vsel %vm45, %v44, 0.0
    %v47 = vrot.slane %v46, 4
    %v48 = vadd.f32 %v46, %v47
    %v49 = vrot.slane %v48, 2
    %v50 = vadd.f32 %v48, %v49
    %v51 = vrot.slane %v50, 1
    %v52 = vadd.f32 %v50, %v51
    %v53 = vmul.f32 %v44, %v44
    %v54 = vsel %vm45, %v53, 0.0
    %v55 = vrot.slane %v54, 4
    %v56 = vadd.f32 %v54, %v55
    %v57 = vrot.slane %v56, 2
    %v58 = vadd.f32 %v56, %v57
    %v59 = vrot.slane %v58, 1
    %v60 = vadd.f32 %v58, %v59
    %v61 = vld [vmem:[#allocation5] sm:$0xff]
    %v62 = vld [vmem:[#allocation5 + $0x8] sm:$0xff]
    %v63 = vld [vmem:[#allocation5 + $0x10] sm:$0xff]
    %v64 = vld [vmem:[#allocation5 + $0x18] sm:$0xff]
    %v65 = vld [vmem:[#allocation5 + $0x20] sm:$0xff]
    %v66 = vld [vmem:[#allocation5 + $0x28] sm:$0xff]
    %v67 = vld [vmem:[#allocation5 + $0x30] sm:$0xff]
    %v68 = vld [vmem:[#allocation5 + $0x38] sm:$0xff]
    %v69 = vld [vmem:[#allocation5 + $0x40] sm:$0xff]
    %v70 = vld [vmem:[#allocation5 + $0x48] sm:$0xff]
    %v71 = vld [vmem:[#allocation5 + $0x50] sm:$0xff]
    %v72 = vld [vmem:[#allocation5 + $0x58] sm:$0xff]
    %v73 = vld [vmem:[#allocation5 + $0x60] sm:$0xff]
    %v74 = vld [vmem:[#allocation5 + $0x68] sm:$0xff]
    %v75 = vld [vmem:[#allocation5 + $0x70] sm:$0xff]
    %v76 = vld [vmem:[#allocation5 + $0x78] sm:$0xff]
    %77 = vmatprep.subr.mxu0 0.0
    %v78 = vand.u32 %v61, 4294901760
    %79 = vmatpush1.msra.mxu0 %v78
    %80 = vmatprep.subr.mxu0 0.0
    %v81 = vand.u32 %v62, 4294901760
    %82 = vmatpush1.msra.mxu0 %v81
    %83 = vmatprep.subr.mxu0 0.0
    %v84 = vand.u32 %v63, 4294901760
    %85 = vmatpush1.msra.mxu0 %v84
    %86 = vmatprep.subr.mxu0 0.0
    %v87 = vand.u32 %v64, 4294901760
    %88 = vmatpush1.msra.mxu0 %v87
    %89 = vmatprep.subr.mxu0 0.0
    %v90 = vand.u32 %v65, 4294901760
    %91 = vmatpush1.msra.mxu0 %v90
    %92 = vmatprep.subr.mxu0 0.0
    %v93 = vand.u32 %v66, 4294901760
    %94 = vmatpush1.msra.mxu0 %v93
    %95 = vmatprep.subr.mxu0 0.0
    %v96 = vand.u32 %v67, 4294901760
    %97 = vmatpush1.msra.mxu0 %v96
    %98 = vmatprep.subr.mxu0 0.0
    %v99 = vand.u32 %v68, 4294901760
    %100 = vmatpush1.msra.mxu0 %v99
    %101 = vmatprep.subr.mxu0 0.0
    %v102 = vand.u32 %v69, 4294901760
    %103 = vmatpush1.msra.mxu0 %v102
    %104 = vmatprep.subr.mxu0 0.0
    %v105 = vand.u32 %v70, 4294901760
    %106 = vmatpush1.msra.mxu0 %v105
    %107 = vmatprep.subr.mxu0 0.0
    %v108 = vand.u32 %v71, 4294901760
    %109 = vmatpush1.msra.mxu0 %v108
    %110 = vmatprep.subr.mxu0 0.0
    %v111 = vand.u32 %v72, 4294901760
    %112 = vmatpush1.msra.mxu0 %v111
    %113 = vmatprep.subr.mxu0 0.0
    %v114 = vand.u32 %v73, 4294901760
    %115 = vmatpush1.msra.mxu0 %v114
    %116 = vmatprep.subr.mxu0 0.0
    %v117 = vand.u32 %v74, 4294901760
    %118 = vmatpush1.msra.mxu0 %v117
    %119 = vmatprep.subr.mxu0 0.0
    %v120 = vand.u32 %v75, 4294901760
    %121 = vmatpush1.msra.mxu0 %v120
    %122 = vmatprep.subr.mxu0 0.0
    %v123 = vand.u32 %v76, 4294901760
    %124 = vmatpush1.msra.mxu0 %v123
    %125 = vmatprep.subr.mxu0 0.0
    %126 = vmatpush1.msra.mxu0 0.0
    %127 = vmatprep.subr.mxu0 0.0
    %128 = vmatpush1.msra.mxu0 0.0
    %129 = vmatprep.subr.mxu0 0.0
    %130 = vmatpush1.msra.mxu0 0.0
    %131 = vmatprep.subr.mxu0 0.0
    %132 = vmatpush1.msra.mxu0 0.0
    %133 = vmatprep.subr.mxu0 0.0
    %134 = vmatpush1.msra.mxu0 0.0
    %135 = vmatprep.subr.mxu0 0.0
    %136 = vmatpush1.msra.mxu0 0.0
    %137 = vmatprep.subr.mxu0 0.0
    %138 = vmatpush1.msra.mxu0 0.0
    %139 = vmatprep.subr.mxu0 0.0
    %140 = vmatpush1.msra.mxu0 0.0
    %141 = vmatprep.subr.mxu0 0.0
    %142 = vmatpush1.msra.mxu0 0.0
    %143 = vmatprep.subr.mxu0 0.0
    %144 = vmatpush1.msra.mxu0 0.0
    %145 = vmatprep.subr.mxu0 0.0
    %146 = vmatpush1.msra.mxu0 0.0
    %147 = vmatprep.subr.mxu0 0.0
    %148 = vmatpush1.msra.mxu0 0.0
    %149 = vmatprep.subr.mxu0 0.0
    %150 = vmatpush1.msra.mxu0 0.0
    %151 = vmatprep.subr.mxu0 0.0
    %152 = vmatpush1.msra.mxu0 0.0
    %153 = vmatprep.subr.mxu0 0.0
    %154 = vmatpush1.msra.mxu0 0.0
    %155 = vmatprep.subr.mxu0 0.0
    %156 = vmatpush1.msra.mxu0 0.0
    %157 = vmatprep.mubr.f32.mxu0 0.0
    %v158 = vand.u32 %v52, 4294901760
    %v159 = vsub.f32 %v52, %v158
    %v160 = vand.u32 %v159, 4294901760
    %v161 = vsub.f32 %v159, %v160
    %v162 = vand.u32 %v161, 4294901760
    %163 = vmatmul.mubr.f32.gmra.mrb[0].mxu0 %v162
    %v164 = vpop.f32.mrb[0].mxu0
    %v165 = vadd.f32 0.0, %v164
    %v166 = vpop.f32.mrb[0].mxu0
    %167 = vdwg.mxu0
    %168 = vmatprep.subr.mxu0 0.0
    %v169 = vand.u32 %v61, 4294901760
    %v170 = vsub.f32 %v61, %v169
    %v171 = vand.u32 %v170, 4294901760
    %v172 = vsub.f32 %v170, %v171
    %v173 = vand.u32 %v172, 4294901760
    %174 = vmatpush1.msra.mxu0 %v173
    %175 = vmatprep.subr.mxu0 0.0
    %v176 = vand.u32 %v62, 4294901760
    %v177 = vsub.f32 %v62, %v176
    %v178 = vand.u32 %v177, 4294901760
    %v179 = vsub.f32 %v177, %v178
    %v180 = vand.u32 %v179, 4294901760
    %181 = vmatpush1.msra.mxu0 %v180
    %182 = vmatprep.subr.mxu0 0.0
    %v183 = vand.u32 %v63, 4294901760
    %v184 = vsub.f32 %v63, %v183
    %v185 = vand.u32 %v184, 4294901760
    %v186 = vsub.f32 %v184, %v185
    %v187 = vand.u32 %v186, 4294901760
    %188 = vmatpush1.msra.mxu0 %v187
    %189 = vmatprep.subr.mxu0 0.0
    %v190 = vand.u32 %v64, 4294901760
    %v191 = vsub.f32 %v64, %v190
    %v192 = vand.u32 %v191, 4294901760
    %v193 = vsub.f32 %v191, %v192
    %v194 = vand.u32 %v193, 4294901760
    %195 = vmatpush1.msra.mxu0 %v194
    %196 = vmatprep.subr.mxu0 0.0
    %v197 = vand.u32 %v65, 4294901760
    %v198 = vsub.f32 %v65, %v197
    %v199 = vand.u32 %v198, 4294901760
    %v200 = vsub.f32 %v198, %v199
    %v201 = vand.u32 %v200, 4294901760
    %202 = vmatpush1.msra.mxu0 %v201
    %203 = vmatprep.subr.mxu0 0.0
    %v204 = vand.u32 %v66, 4294901760
    %v205 = vsub.f32 %v66, %v204
    %v206 = vand.u32 %v205, 4294901760
    %v207 = vsub.f32 %v205, %v206
    %v208 = vand.u32 %v207, 4294901760
    %209 = vmatpush1.msra.mxu0 %v208
    %210 = vmatprep.subr.mxu0 0.0
    %v211 = vand.u32 %v67, 4294901760
    %v212 = vsub.f32 %v67, %v211
    %v213 = vand.u32 %v212, 4294901760
    %v214 = vsub.f32 %v212, %v213
    %v215 = vand.u32 %v214, 4294901760
    %216 = vmatpush1.msra.mxu0 %v215
    %217 = vmatprep.subr.mxu0 0.0
    %v218 = vand.u32 %v68, 4294901760
    %v219 = vsub.f32 %v68, %v218
    %v220 = vand.u32 %v219, 4294901760
    %v221 = vsub.f32 %v219, %v220
    %v222 = vand.u32 %v221, 4294901760
    %223 = vmatpush1.msra.mxu0 %v222
    %224 = vmatprep.subr.mxu0 0.0
    %v225 = vand.u32 %v69, 4294901760
    %v226 = vsub.f32 %v69, %v225
    %v227 = vand.u32 %v226, 4294901760
    %v228 = vsub.f32 %v226, %v227
    %v229 = vand.u32 %v228, 4294901760
    %230 = vmatpush1.msra.mxu0 %v229
    %231 = vmatprep.subr.mxu0 0.0
    %v232 = vand.u32 %v70, 4294901760
    %v233 = vsub.f32 %v70, %v232
    %v234 = vand.u32 %v233, 4294901760
    %v235 = vsub.f32 %v233, %v234
    %v236 = vand.u32 %v235, 4294901760
    %237 = vmatpush1.msra.mxu0 %v236
    %238 = vmatprep.subr.mxu0 0.0
    %v239 = vand.u32 %v71, 4294901760
    %v240 = vsub.f32 %v71, %v239
    %v241 = vand.u32 %v240, 4294901760
    %v242 = vsub.f32 %v240, %v241
    %v243 = vand.u32 %v242, 4294901760
    %244 = vmatpush1.msra.mxu0 %v243
    %245 = vmatprep.subr.mxu0 0.0
    %v246 = vand.u32 %v72, 4294901760
    %v247 = vsub.f32 %v72, %v246
    %v248 = vand.u32 %v247, 4294901760
    %v249 = vsub.f32 %v247, %v248
    %v250 = vand.u32 %v249, 4294901760
    %251 = vmatpush1.msra.mxu0 %v250
    %252 = vmatprep.subr.mxu0 0.0
    %v253 = vand.u32 %v73, 4294901760
    %v254 = vsub.f32 %v73, %v253
    %v255 = vand.u32 %v254, 4294901760
    %v256 = vsub.f32 %v254, %v255
    %v257 = vand.u32 %v256, 4294901760
    %258 = vmatpush1.msra.mxu0 %v257
    %259 = vmatprep.subr.mxu0 0.0
    %v260 = vand.u32 %v74, 4294901760
    %v261 = vsub.f32 %v74, %v260
    %v262 = vand.u32 %v261, 4294901760
    %v263 = vsub.f32 %v261, %v262
    %v264 = vand.u32 %v263, 4294901760
    %265 = vmatpush1.msra.mxu0 %v264
    %266 = vmatprep.subr.mxu0 0.0
    %v267 = vand.u32 %v75, 4294901760
    %v268 = vsub.f32 %v75, %v267
    %v269 = vand.u32 %v268, 4294901760
    %v270 = vsub.f32 %v268, %v269
    %v271 = vand.u32 %v270, 4294901760
    %272 = vmatpush1.msra.mxu0 %v271
    %273 = vmatprep.subr.mxu0 0.0
    %v274 = vand.u32 %v76, 4294901760
    %v275 = vsub.f32 %v76, %v274
    %v276 = vand.u32 %v275, 4294901760
    %v277 = vsub.f32 %v275, %v276
    %v278 = vand.u32 %v277, 4294901760
    %279 = vmatpush1.msra.mxu0 %v278
    %280 = vmatprep.subr.mxu0 0.0
    %281 = vmatpush1.msra.mxu0 0.0
    %282 = vmatprep.subr.mxu0 0.0
    %283 = vmatpush1.msra.mxu0 0.0
    %284 = vmatprep.subr.mxu0 0.0
    %285 = vmatpush1.msra.mxu0 0.0
    %286 = vmatprep.subr.mxu0 0.0
    %287 = vmatpush1.msra.mxu0 0.0
    %288 = vmatprep.subr.mxu0 0.0
    %289 = vmatpush1.msra.mxu0 0.0
    %290 = vmatprep.subr.mxu0 0.0
    %291 = vmatpush1.msra.mxu0 0.0
    %292 = vmatprep.subr.mxu0 0.0
    %293 = vmatpush1.msra.mxu0 0.0
    %294 = vmatprep.subr.mxu0 0.0
    %295 = vmatpush1.msra.mxu0 0.0
    %296 = vmatprep.subr.mxu0 0.0
    %297 = vmatpush1.msra.mxu0 0.0
    %298 = vmatprep.subr.mxu0 0.0
    %299 = vmatpush1.msra.mxu0 0.0
    %300 = vmatprep.subr.mxu0 0.0
    %301 = vmatpush1.msra.mxu0 0.0
    %302 = vmatprep.subr.mxu0 0.0
    %303 = vmatpush1.msra.mxu0 0.0
    %304 = vmatprep.subr.mxu0 0.0
    %305 = vmatpush1.msra.mxu0 0.0
    %306 = vmatprep.subr.mxu0 0.0
    %307 = vmatpush1.msra.mxu0 0.0
    %308 = vmatprep.subr.mxu0 0.0
    %309 = vmatpush1.msra.mxu0 0.0
    %310 = vmatprep.subr.mxu0 0.0
    %311 = vmatpush1.msra.mxu0 0.0
    %312 = vmatprep.mubr.f32.mxu0 0.0
    %v313 = vand.u32 %v52, 4294901760
    %314 = vmatmul.mubr.f32.gmra.mrb[0].mxu0 %v313
    %v315 = vpop.f32.mrb[0].mxu0
    %v316 = vadd.f32 %v165, %v315
    %v317 = vpop.f32.mrb[0].mxu0
    %318 = vdwg.mxu0
    %319 = vmatprep.subr.mxu0 0.0
    %v320 = vand.u32 %v61, 4294901760
    %v321 = vsub.f32 %v61, %v320
    %322 = vmatpush1.msra.mxu0 %v321
    %323 = vmatprep.subr.mxu0 0.0
    %v324 = vand.u32 %v62, 4294901760
    %v325 = vsub.f32 %v62, %v324
    %326 = vmatpush1.msra.mxu0 %v325
    %327 = vmatprep.subr.mxu0 0.0
    %v328 = vand.u32 %v63, 4294901760
    %v329 = vsub.f32 %v63, %v328
    %330 = vmatpush1.msra.mxu0 %v329
    %331 = vmatprep.subr.mxu0 0.0
    %v332 = vand.u32 %v64, 4294901760
    %v333 = vsub.f32 %v64, %v332
    %334 = vmatpush1.msra.mxu0 %v333
    %335 = vmatprep.subr.mxu0 0.0
    %v336 = vand.u32 %v65, 4294901760
    %v337 = vsub.f32 %v65, %v336
    %338 = vmatpush1.msra.mxu0 %v337
    %339 = vmatprep.subr.mxu0 0.0
    %v340 = vand.u32 %v66, 4294901760
    %v341 = vsub.f32 %v66, %v340
    %342 = vmatpush1.msra.mxu0 %v341
    %343 = vmatprep.subr.mxu0 0.0
    %v344 = vand.u32 %v67, 4294901760
    %v345 = vsub.f32 %v67, %v344
    %346 = vmatpush1.msra.mxu0 %v345
    %347 = vmatprep.subr.mxu0 0.0
    %v348 = vand.u32 %v68, 4294901760
    %v349 = vsub.f32 %v68, %v348
    %350 = vmatpush1.msra.mxu0 %v349
    %351 = vmatprep.subr.mxu0 0.0
    %v352 = vand.u32 %v69, 4294901760
    %v353 = vsub.f32 %v69, %v352
    %354 = vmatpush1.msra.mxu0 %v353
    %355 = vmatprep.subr.mxu0 0.0
    %v356 = vand.u32 %v70, 4294901760
    %v357 = vsub.f32 %v70, %v356
    %358 = vmatpush1.msra.mxu0 %v357
    %359 = vmatprep.subr.mxu0 0.0
    %v360 = vand.u32 %v71, 4294901760
    %v361 = vsub.f32 %v71, %v360
    %362 = vmatpush1.msra.mxu0 %v361
    %363 = vmatprep.subr.mxu0 0.0
    %v364 = vand.u32 %v72, 4294901760
    %v365 = vsub.f32 %v72, %v364
    %366 = vmatpush1.msra.mxu0 %v365
    %367 = vmatprep.subr.mxu0 0.0
    %v368 = vand.u32 %v73, 4294901760
    %v369 = vsub.f32 %v73, %v368
    %370 = vmatpush1.msra.mxu0 %v369
    %371 = vmatprep.subr.mxu0 0.0
    %v372 = vand.u32 %v74, 4294901760
    %v373 = vsub.f32 %v74, %v372
    %374 = vmatpush1.msra.mxu0 %v373
    %375 = vmatprep.subr.mxu0 0.0
    %v376 = vand.u32 %v75, 4294901760
    %v377 = vsub.f32 %v75, %v376
    %378 = vmatpush1.msra.mxu0 %v377
    %379 = vmatprep.subr.mxu0 0.0
    %v380 = vand.u32 %v76, 4294901760
    %v381 = vsub.f32 %v76, %v380
    %382 = vmatpush1.msra.mxu0 %v381
    %383 = vmatprep.subr.mxu0 0.0
    %384 = vmatpush1.msra.mxu0 0.0
    %385 = vmatprep.subr.mxu0 0.0
    %386 = vmatpush1.msra.mxu0 0.0
    %387 = vmatprep.subr.mxu0 0.0
    %388 = vmatpush1.msra.mxu0 0.0
    %389 = vmatprep.subr.mxu0 0.0
    %390 = vmatpush1.msra.mxu0 0.0
    %391 = vmatprep.subr.mxu0 0.0
    %392 = vmatpush1.msra.mxu0 0.0
    %393 = vmatprep.subr.mxu0 0.0
    %394 = vmatpush1.msra.mxu0 0.0
    %395 = vmatprep.subr.mxu0 0.0
    %396 = vmatpush1.msra.mxu0 0.0
    %397 = vmatprep.subr.mxu0 0.0
    %398 = vmatpush1.msra.mxu0 0.0
    %399 = vmatprep.subr.mxu0 0.0
    %400 = vmatpush1.msra.mxu0 0.0
    %401 = vmatprep.subr.mxu0 0.0
    %402 = vmatpush1.msra.mxu0 0.0
    %403 = vmatprep.subr.mxu0 0.0
    %404 = vmatpush1.msra.mxu0 0.0
    %405 = vmatprep.subr.mxu0 0.0
    %406 = vmatpush1.msra.mxu0 0.0
    %407 = vmatprep.subr.mxu0 0.0
    %408 = vmatpush1.msra.mxu0 0.0
    %409 = vmatprep.subr.mxu0 0.0
    %410 = vmatpush1.msra.mxu0 0.0
    %411 = vmatprep.subr.mxu0 0.0
    %412 = vmatpush1.msra.mxu0 0.0
    %413 = vmatprep.subr.mxu0 0.0
    %414 = vmatpush1.msra.mxu0 0.0
    %415 = vmatprep.mubr.f32.mxu0 0.0
    %v416 = vand.u32 %v52, 4294901760
    %v417 = vsub.f32 %v52, %v416
    %418 = vmatmul.mubr.f32.gmra.mrb[0].mxu0 %v417
    %v419 = vpop.f32.mrb[0].mxu0
    %v420 = vadd.f32 %v316, %v419
    %v421 = vpop.f32.mrb[0].mxu0
    %422 = vdwg.mxu0
    %423 = vmatprep.subr.mxu0 0.0
    %v424 = vand.u32 %v61, 4294901760
    %425 = vmatpush1.msra.mxu0 %v424
    %426 = vmatprep.subr.mxu0 0.0
    %v427 = vand.u32 %v62, 4294901760
    %428 = vmatpush1.msra.mxu0 %v427
    %429 = vmatprep.subr.mxu0 0.0
    %v430 = vand.u32 %v63, 4294901760
    %431 = vmatpush1.msra.mxu0 %v430
    %432 = vmatprep.subr.mxu0 0.0
    %v433 = vand.u32 %v64, 4294901760
    %434 = vmatpush1.msra.mxu0 %v433
    %435 = vmatprep.subr.mxu0 0.0
    %v436 = vand.u32 %v65, 4294901760
    %437 = vmatpush1.msra.mxu0 %v436
    %438 = vmatprep.subr.mxu0 0.0
    %v439 = vand.u32 %v66, 4294901760
    %440 = vmatpush1.msra.mxu0 %v439
    %441 = vmatprep.subr.mxu0 0.0
    %v442 = vand.u32 %v67, 4294901760
    %443 = vmatpush1.msra.mxu0 %v442
    %444 = vmatprep.subr.mxu0 0.0
    %v445 = vand.u32 %v68, 4294901760
    %446 = vmatpush1.msra.mxu0 %v445
    %447 = vmatprep.subr.mxu0 0.0
    %v448 = vand.u32 %v69, 4294901760
    %449 = vmatpush1.msra.mxu0 %v448
    %450 = vmatprep.subr.mxu0 0.0
    %v451 = vand.u32 %v70, 4294901760
    %452 = vmatpush1.msra.mxu0 %v451
    %453 = vmatprep.subr.mxu0 0.0
    %v454 = vand.u32 %v71, 4294901760
    %455 = vmatpush1.msra.mxu0 %v454
    %456 = vmatprep.subr.mxu0 0.0
    %v457 = vand.u32 %v72, 4294901760
    %458 = vmatpush1.msra.mxu0 %v457
    %459 = vmatprep.subr.mxu0 0.0
    %v460 = vand.u32 %v73, 4294901760
    %461 = vmatpush1.msra.mxu0 %v460
    %462 = vmatprep.subr.mxu0 0.0
    %v463 = vand.u32 %v74, 4294901760
    %464 = vmatpush1.msra.mxu0 %v463
    %465 = vmatprep.subr.mxu0 0.0
    %v466 = vand.u32 %v75, 4294901760
    %467 = vmatpush1.msra.mxu0 %v466
    %468 = vmatprep.subr.mxu0 0.0
    %v469 = vand.u32 %v76, 4294901760
    %470 = vmatpush1.msra.mxu0 %v469
    %471 = vmatprep.subr.mxu0 0.0
    %472 = vmatpush1.msra.mxu0 0.0
    %473 = vmatprep.subr.mxu0 0.0
    %474 = vmatpush1.msra.mxu0 0.0
    %475 = vmatprep.subr.mxu0 0.0
    %476 = vmatpush1.msra.mxu0 0.0
    %477 = vmatprep.subr.mxu0 0.0
    %478 = vmatpush1.msra.mxu0 0.0
    %479 = vmatprep.subr.mxu0 0.0
    %480 = vmatpush1.msra.mxu0 0.0
    %481 = vmatprep.subr.mxu0 0.0
    %482 = vmatpush1.msra.mxu0 0.0
    %483 = vmatprep.subr.mxu0 0.0
    %484 = vmatpush1.msra.mxu0 0.0
    %485 = vmatprep.subr.mxu0 0.0
    %486 = vmatpush1.msra.mxu0 0.0
    %487 = vmatprep.subr.mxu0 0.0
    %488 = vmatpush1.msra.mxu0 0.0
    %489 = vmatprep.subr.mxu0 0.0
    %490 = vmatpush1.msra.mxu0 0.0
    %491 = vmatprep.subr.mxu0 0.0
    %492 = vmatpush1.msra.mxu0 0.0
    %493 = vmatprep.subr.mxu0 0.0
    %494 = vmatpush1.msra.mxu0 0.0
    %495 = vmatprep.subr.mxu0 0.0
    %496 = vmatpush1.msra.mxu0 0.0
    %497 = vmatprep.subr.mxu0 0.0
    %498 = vmatpush1.msra.mxu0 0.0
    %499 = vmatprep.subr.mxu0 0.0
    %500 = vmatpush1.msra.mxu0 0.0
    %501 = vmatprep.subr.mxu0 0.0
    %502 = vmatpush1.msra.mxu0 0.0
    %503 = vmatprep.mubr.f32.mxu0 0.0
    %v504 = vand.u32 %v52, 4294901760
    %v505 = vsub.f32 %v52, %v504
    %v506 = vand.u32 %v505, 4294901760
    %507 = vmatmul.mubr.f32.gmra.mrb[0].mxu0 %v506
    %v508 = vpop.f32.mrb[0].mxu0
    %v509 = vadd.f32 %v420, %v508
    %v510 = vpop.f32.mrb[0].mxu0
    %511 = vdwg.mxu0
    %512 = vmatprep.subr.mxu0 0.0
    %v513 = vand.u32 %v61, 4294901760
    %v514 = vsub.f32 %v61, %v513
    %v515 = vand.u32 %v514, 4294901760
    %516 = vmatpush1.msra.mxu0 %v515
    %517 = vmatprep.subr.mxu0 0.0
    %v518 = vand.u32 %v62, 4294901760
    %v519 = vsub.f32 %v62, %v518
    %v520 = vand.u32 %v519, 4294901760
    %521 = vmatpush1.msra.mxu0 %v520
    %522 = vmatprep.subr.mxu0 0.0
    %v523 = vand.u32 %v63, 4294901760
    %v524 = vsub.f32 %v63, %v523
    %v525 = vand.u32 %v524, 4294901760
    %526 = vmatpush1.msra.mxu0 %v525
    %527 = vmatprep.subr.mxu0 0.0
    %v528 = vand.u32 %v64, 4294901760
    %v529 = vsub.f32 %v64, %v528
    %v530 = vand.u32 %v529, 4294901760
    %531 = vmatpush1.msra.mxu0 %v530
    %532 = vmatprep.subr.mxu0 0.0
    %v533 = vand.u32 %v65, 4294901760
    %v534 = vsub.f32 %v65, %v533
    %v535 = vand.u32 %v534, 4294901760
    %536 = vmatpush1.msra.mxu0 %v535
    %537 = vmatprep.subr.mxu0 0.0
    %v538 = vand.u32 %v66, 4294901760
    %v539 = vsub.f32 %v66, %v538
    %v540 = vand.u32 %v539, 4294901760
    %541 = vmatpush1.msra.mxu0 %v540
    %542 = vmatprep.subr.mxu0 0.0
    %v543 = vand.u32 %v67, 4294901760
    %v544 = vsub.f32 %v67, %v543
    %v545 = vand.u32 %v544, 4294901760
    %546 = vmatpush1.msra.mxu0 %v545
    %547 = vmatprep.subr.mxu0 0.0
    %v548 = vand.u32 %v68, 4294901760
    %v549 = vsub.f32 %v68, %v548
    %v550 = vand.u32 %v549, 4294901760
    %551 = vmatpush1.msra.mxu0 %v550
    %552 = vmatprep.subr.mxu0 0.0
    %v553 = vand.u32 %v69, 4294901760
    %v554 = vsub.f32 %v69, %v553
    %v555 = vand.u32 %v554, 4294901760
    %556 = vmatpush1.msra.mxu0 %v555
    %557 = vmatprep.subr.mxu0 0.0
    %v558 = vand.u32 %v70, 4294901760
    %v559 = vsub.f32 %v70, %v558
    %v560 = vand.u32 %v559, 4294901760
    %561 = vmatpush1.msra.mxu0 %v560
    %562 = vmatprep.subr.mxu0 0.0
    %v563 = vand.u32 %v71, 4294901760
    %v564 = vsub.f32 %v71, %v563
    %v565 = vand.u32 %v564, 4294901760
    %566 = vmatpush1.msra.mxu0 %v565
    %567 = vmatprep.subr.mxu0 0.0
    %v568 = vand.u32 %v72, 4294901760
    %v569 = vsub.f32 %v72, %v568
    %v570 = vand.u32 %v569, 4294901760
    %571 = vmatpush1.msra.mxu0 %v570
    %572 = vmatprep.subr.mxu0 0.0
    %v573 = vand.u32 %v73, 4294901760
    %v574 = vsub.f32 %v73, %v573
    %v575 = vand.u32 %v574, 4294901760
    %576 = vmatpush1.msra.mxu0 %v575
    %577 = vmatprep.subr.mxu0 0.0
    %v578 = vand.u32 %v74, 4294901760
    %v579 = vsub.f32 %v74, %v578
    %v580 = vand.u32 %v579, 4294901760
    %581 = vmatpush1.msra.mxu0 %v580
    %582 = vmatprep.subr.mxu0 0.0
    %v583 = vand.u32 %v75, 4294901760
    %v584 = vsub.f32 %v75, %v583
    %v585 = vand.u32 %v584, 4294901760
    %586 = vmatpush1.msra.mxu0 %v585
    %587 = vmatprep.subr.mxu0 0.0
    %v588 = vand.u32 %v76, 4294901760
    %v589 = vsub.f32 %v76, %v588
    %v590 = vand.u32 %v589, 4294901760
    %591 = vmatpush1.msra.mxu0 %v590
    %592 = vmatprep.subr.mxu0 0.0
    %593 = vmatpush1.msra.mxu0 0.0
    %594 = vmatprep.subr.mxu0 0.0
    %595 = vmatpush1.msra.mxu0 0.0
    %596 = vmatprep.subr.mxu0 0.0
    %597 = vmatpush1.msra.mxu0 0.0
    %598 = vmatprep.subr.mxu0 0.0
    %599 = vmatpush1.msra.mxu0 0.0
    %600 = vmatprep.subr.mxu0 0.0
    %601 = vmatpush1.msra.mxu0 0.0
    %602 = vmatprep.subr.mxu0 0.0
    %603 = vmatpush1.msra.mxu0 0.0
    %604 = vmatprep.subr.mxu0 0.0
    %605 = vmatpush1.msra.mxu0 0.0
    %606 = vmatprep.subr.mxu0 0.0
    %607 = vmatpush1.msra.mxu0 0.0
    %608 = vmatprep.subr.mxu0 0.0
    %609 = vmatpush1.msra.mxu0 0.0
    %610 = vmatprep.subr.mxu0 0.0
    %611 = vmatpush1.msra.mxu0 0.0
    %612 = vmatprep.subr.mxu0 0.0
    %613 = vmatpush1.msra.mxu0 0.0
    %614 = vmatprep.subr.mxu0 0.0
    %615 = vmatpush1.msra.mxu0 0.0
    %616 = vmatprep.subr.mxu0 0.0
    %617 = vmatpush1.msra.mxu0 0.0
    %618 = vmatprep.subr.mxu0 0.0
    %619 = vmatpush1.msra.mxu0 0.0
    %620 = vmatprep.subr.mxu0 0.0
    %621 = vmatpush1.msra.mxu0 0.0
    %622 = vmatprep.subr.mxu0 0.0
    %623 = vmatpush1.msra.mxu0 0.0
    %624 = vmatprep.mubr.f32.mxu0 0.0
    %v625 = vand.u32 %v52, 4294901760
    %626 = vmatmul.mubr.f32.gmra.mrb[0].mxu0 %v625
    %v627 = vpop.f32.mrb[0].mxu0
    %v628 = vadd.f32 %v509, %v627
    %v629 = vpop.f32.mrb[0].mxu0
    %630 = vdwg.mxu0
    %631 = vmatprep.subr.mxu0 0.0
    %v632 = vand.u32 %v61, 4294901760
    %633 = vmatpush1.msra.mxu0 %v632
    %634 = vmatprep.subr.mxu0 0.0
    %v635 = vand.u32 %v62, 4294901760
    %636 = vmatpush1.msra.mxu0 %v635
    %637 = vmatprep.subr.mxu0 0.0
    %v638 = vand.u32 %v63, 4294901760
    %639 = vmatpush1.msra.mxu0 %v638
    %640 = vmatprep.subr.mxu0 0.0
    %v641 = vand.u32 %v64, 4294901760
    %642 = vmatpush1.msra.mxu0 %v641
    %643 = vmatprep.subr.mxu0 0.0
    %v644 = vand.u32 %v65, 4294901760
    %645 = vmatpush1.msra.mxu0 %v644
    %646 = vmatprep.subr.mxu0 0.0
    %v647 = vand.u32 %v66, 4294901760
    %648 = vmatpush1.msra.mxu0 %v647
    %649 = vmatprep.subr.mxu0 0.0
    %v650 = vand.u32 %v67, 4294901760
    %651 = vmatpush1.msra.mxu0 %v650
    %652 = vmatprep.subr.mxu0 0.0
    %v653 = vand.u32 %v68, 4294901760
    %654 = vmatpush1.msra.mxu0 %v653
    %655 = vmatprep.subr.mxu0 0.0
    %v656 = vand.u32 %v69, 4294901760
    %657 = vmatpush1.msra.mxu0 %v656
    %658 = vmatprep.subr.mxu0 0.0
    %v659 = vand.u32 %v70, 4294901760
    %660 = vmatpush1.msra.mxu0 %v659
    %661 = vmatprep.subr.mxu0 0.0
    %v662 = vand.u32 %v71, 4294901760
    %663 = vmatpush1.msra.mxu0 %v662
    %664 = vmatprep.subr.mxu0 0.0
    %v665 = vand.u32 %v72, 4294901760
    %666 = vmatpush1.msra.mxu0 %v665
    %667 = vmatprep.subr.mxu0 0.0
    %v668 = vand.u32 %v73, 4294901760
    %669 = vmatpush1.msra.mxu0 %v668
    %670 = vmatprep.subr.mxu0 0.0
    %v671 = vand.u32 %v74, 4294901760
    %672 = vmatpush1.msra.mxu0 %v671
    %673 = vmatprep.subr.mxu0 0.0
    %v674 = vand.u32 %v75, 4294901760
    %675 = vmatpush1.msra.mxu0 %v674
    %676 = vmatprep.subr.mxu0 0.0
    %v677 = vand.u32 %v76, 4294901760
    %678 = vmatpush1.msra.mxu0 %v677
    %679 = vmatprep.subr.mxu0 0.0
    %680 = vmatpush1.msra.mxu0 0.0
    %681 = vmatprep.subr.mxu0 0.0
    %682 = vmatpush1.msra.mxu0 0.0
    %683 = vmatprep.subr.mxu0 0.0
    %684 = vmatpush1.msra.mxu0 0.0
    %685 = vmatprep.subr.mxu0 0.0
    %686 = vmatpush1.msra.mxu0 0.0
    %687 = vmatprep.subr.mxu0 0.0
    %688 = vmatpush1.msra.mxu0 0.0
    %689 = vmatprep.subr.mxu0 0.0
    %690 = vmatpush1.msra.mxu0 0.0
    %691 = vmatprep.subr.mxu0 0.0
    %692 = vmatpush1.msra.mxu0 0.0
    %693 = vmatprep.subr.mxu0 0.0
    %694 = vmatpush1.msra.mxu0 0.0
    %695 = vmatprep.subr.mxu0 0.0
    %696 = vmatpush1.msra.mxu0 0.0
    %697 = vmatprep.subr.mxu0 0.0
    %698 = vmatpush1.msra.mxu0 0.0
    %699 = vmatprep.subr.mxu0 0.0
    %700 = vmatpush1.msra.mxu0 0.0
    %701 = vmatprep.subr.mxu0 0.0
    %702 = vmatpush1.msra.mxu0 0.0
    %703 = vmatprep.subr.mxu0 0.0
    %704 = vmatpush1.msra.mxu0 0.0
    %705 = vmatprep.subr.mxu0 0.0
    %706 = vmatpush1.msra.mxu0 0.0
    %707 = vmatprep.subr.mxu0 0.0
    %708 = vmatpush1.msra.mxu0 0.0
    %709 = vmatprep.subr.mxu0 0.0
    %710 = vmatpush1.msra.mxu0 0.0
    %711 = vmatprep.mubr.f32.mxu0 0.0
    %v712 = vand.u32 %v52, 4294901760
    %713 = vmatmul.mubr.f32.gmra.mrb[0].mxu0 %v712
    %v714 = vpop.f32.mrb[0].mxu0
    %v715 = vadd.f32 %v628, %v714
    %v716 = vpop.f32.mrb[0].mxu0
    %717 = vdwg.mxu0
    %718 = vmatprep.subr.mxu0 0.0
    %v719 = vand.u32 %v61, 4294901760
    %720 = vmatpush1.msra.mxu0 %v719
    %721 = vmatprep.subr.mxu0 0.0
    %v722 = vand.u32 %v62, 4294901760
    %723 = vmatpush1.msra.mxu0 %v722
    %724 = vmatprep.subr.mxu0 0.0
    %v725 = vand.u32 %v63, 4294901760
    %726 = vmatpush1.msra.mxu0 %v725
    %727 = vmatprep.subr.mxu0 0.0
    %v728 = vand.u32 %v64, 4294901760
    %729 = vmatpush1.msra.mxu0 %v728
    %730 = vmatprep.subr.mxu0 0.0
    %v731 = vand.u32 %v65, 4294901760
    %732 = vmatpush1.msra.mxu0 %v731
    %733 = vmatprep.subr.mxu0 0.0
    %v734 = vand.u32 %v66, 4294901760
    %735 = vmatpush1.msra.mxu0 %v734
    %736 = vmatprep.subr.mxu0 0.0
    %v737 = vand.u32 %v67, 4294901760
    %738 = vmatpush1.msra.mxu0 %v737
    %739 = vmatprep.subr.mxu0 0.0
    %v740 = vand.u32 %v68, 4294901760
    %741 = vmatpush1.msra.mxu0 %v740
    %742 = vmatprep.subr.mxu0 0.0
    %v743 = vand.u32 %v69, 4294901760
    %744 = vmatpush1.msra.mxu0 %v743
    %745 = vmatprep.subr.mxu0 0.0
    %v746 = vand.u32 %v70, 4294901760
    %747 = vmatpush1.msra.mxu0 %v746
    %748 = vmatprep.subr.mxu0 0.0
    %v749 = vand.u32 %v71, 4294901760
    %750 = vmatpush1.msra.mxu0 %v749
    %751 = vmatprep.subr.mxu0 0.0
    %v752 = vand.u32 %v72, 4294901760
    %753 = vmatpush1.msra.mxu0 %v752
    %754 = vmatprep.subr.mxu0 0.0
    %v755 = vand.u32 %v73, 4294901760
    %756 = vmatpush1.msra.mxu0 %v755
    %757 = vmatprep.subr.mxu0 0.0
    %v758 = vand.u32 %v74, 4294901760
    %759 = vmatpush1.msra.mxu0 %v758
    %760 = vmatprep.subr.mxu0 0.0
    %v761 = vand.u32 %v75, 4294901760
    %762 = vmatpush1.msra.mxu0 %v761
    %763 = vmatprep.subr.mxu0 0.0
    %v764 = vand.u32 %v76, 4294901760
    %765 = vmatpush1.msra.mxu0 %v764
    %766 = vmatprep.subr.mxu0 0.0
    %767 = vmatpush1.msra.mxu0 0.0
    %768 = vmatprep.subr.mxu0 0.0
    %769 = vmatpush1.msra.mxu0 0.0
    %770 = vmatprep.subr.mxu0 0.0
    %771 = vmatpush1.msra.mxu0 0.0
    %772 = vmatprep.subr.mxu0 0.0
    %773 = vmatpush1.msra.mxu0 0.0
    %774 = vmatprep.subr.mxu0 0.0
    %775 = vmatpush1.msra.mxu0 0.0
    %776 = vmatprep.subr.mxu0 0.0
    %777 = vmatpush1.msra.mxu0 0.0
    %778 = vmatprep.subr.mxu0 0.0
    %779 = vmatpush1.msra.mxu0 0.0
    %780 = vmatprep.subr.mxu0 0.0
    %781 = vmatpush1.msra.mxu0 0.0
    %782 = vmatprep.subr.mxu0 0.0
    %783 = vmatpush1.msra.mxu0 0.0
    %784 = vmatprep.subr.mxu0 0.0
    %785 = vmatpush1.msra.mxu0 0.0
    %786 = vmatprep.subr.mxu0 0.0
    %787 = vmatpush1.msra.mxu0 0.0
    %788 = vmatprep.subr.mxu0 0.0
    %789 = vmatpush1.msra.mxu0 0.0
    %790 = vmatprep.subr.mxu0 0.0
    %791 = vmatpush1.msra.mxu0 0.0
    %792 = vmatprep.subr.mxu0 0.0
    %793 = vmatpush1.msra.mxu0 0.0
    %794 = vmatprep.subr.mxu0 0.0
    %795 = vmatpush1.msra.mxu0 0.0
    %796 = vmatprep.subr.mxu0 0.0
    %797 = vmatpush1.msra.mxu0 0.0
    %798 = vmatprep.mubr.f32.mxu0 0.0
    %v799 = vand.u32 %v60, 4294901760
    %v800 = vsub.f32 %v60, %v799
    %v801 = vand.u32 %v800, 4294901760
    %v802 = vsub.f32 %v800, %v801
    %v803 = vand.u32 %v802, 4294901760
    %804 = vmatmul.mubr.f32.gmra.mrb[0].mxu0 %v803
    %v805 = vpop.f32.mrb[0].mxu0
    %v806 = vadd.f32 0.0, %v805
    %v807 = vpop.f32.mrb[0].mxu0
    %808 = vdwg.mxu0
    %809 = vmatprep.subr.mxu0 0.0
    %v810 = vand.u32 %v61, 4294901760
    %v811 = vsub.f32 %v61, %v810
    %v812 = vand.u32 %v811, 4294901760
    %v813 = vsub.f32 %v811, %v812
    %v814 = vand.u32 %v813, 4294901760
    %815 = vmatpush1.msra.mxu0 %v814
    %816 = vmatprep.subr.mxu0 0.0
    %v817 = vand.u32 %v62, 4294901760
    %v818 = vsub.f32 %v62, %v817
    %v819 = vand.u32 %v818, 4294901760
    %v820 = vsub.f32 %v818, %v819
    %v821 = vand.u32 %v820, 4294901760
    %822 = vmatpush1.msra.mxu0 %v821
    %823 = vmatprep.subr.mxu0 0.0
    %v824 = vand.u32 %v63, 4294901760
    %v825 = vsub.f32 %v63, %v824
    %v826 = vand.u32 %v825, 4294901760
    %v827 = vsub.f32 %v825, %v826
    %v828 = vand.u32 %v827, 4294901760
    %829 = vmatpush1.msra.mxu0 %v828
    %830 = vmatprep.subr.mxu0 0.0
    %v831 = vand.u32 %v64, 4294901760
    %v832 = vsub.f32 %v64, %v831
    %v833 = vand.u32 %v832, 4294901760
    %v834 = vsub.f32 %v832, %v833
    %v835 = vand.u32 %v834, 4294901760
    %836 = vmatpush1.msra.mxu0 %v835
    %837 = vmatprep.subr.mxu0 0.0
    %v838 = vand.u32 %v65, 4294901760
    %v839 = vsub.f32 %v65, %v838
    %v840 = vand.u32 %v839, 4294901760
    %v841 = vsub.f32 %v839, %v840
    %v842 = vand.u32 %v841, 4294901760
    %843 = vmatpush1.msra.mxu0 %v842
    %844 = vmatprep.subr.mxu0 0.0
    %v845 = vand.u32 %v66, 4294901760
    %v846 = vsub.f32 %v66, %v845
    %v847 = vand.u32 %v846, 4294901760
    %v848 = vsub.f32 %v846, %v847
    %v849 = vand.u32 %v848, 4294901760
    %850 = vmatpush1.msra.mxu0 %v849
    %851 = vmatprep.subr.mxu0 0.0
    %v852 = vand.u32 %v67, 4294901760
    %v853 = vsub.f32 %v67, %v852
    %v854 = vand.u32 %v853, 4294901760
    %v855 = vsub.f32 %v853, %v854
    %v856 = vand.u32 %v855, 4294901760
    %857 = vmatpush1.msra.mxu0 %v856
    %858 = vmatprep.subr.mxu0 0.0
    %v859 = vand.u32 %v68, 4294901760
    %v860 = vsub.f32 %v68, %v859
    %v861 = vand.u32 %v860, 4294901760
    %v862 = vsub.f32 %v860, %v861
    %v863 = vand.u32 %v862, 4294901760
    %864 = vmatpush1.msra.mxu0 %v863
    %865 = vmatprep.subr.mxu0 0.0
    %v866 = vand.u32 %v69, 4294901760
    %v867 = vsub.f32 %v69, %v866
    %v868 = vand.u32 %v867, 4294901760
    %v869 = vsub.f32 %v867, %v868
    %v870 = vand.u32 %v869, 4294901760
    %871 = vmatpush1.msra.mxu0 %v870
    %872 = vmatprep.subr.mxu0 0.0
    %v873 = vand.u32 %v70, 4294901760
    %v874 = vsub.f32 %v70, %v873
    %v875 = vand.u32 %v874, 4294901760
    %v876 = vsub.f32 %v874, %v875
    %v877 = vand.u32 %v876, 4294901760
    %878 = vmatpush1.msra.mxu0 %v877
    %879 = vmatprep.subr.mxu0 0.0
    %v880 = vand.u32 %v71, 4294901760
    %v881 = vsub.f32 %v71, %v880
    %v882 = vand.u32 %v881, 4294901760
    %v883 = vsub.f32 %v881, %v882
    %v884 = vand.u32 %v883, 4294901760
    %885 = vmatpush1.msra.mxu0 %v884
    %886 = vmatprep.subr.mxu0 0.0
    %v887 = vand.u32 %v72, 4294901760
    %v888 = vsub.f32 %v72, %v887
    %v889 = vand.u32 %v888, 4294901760
    %v890 = vsub.f32 %v888, %v889
    %v891 = vand.u32 %v890, 4294901760
    %892 = vmatpush1.msra.mxu0 %v891
    %893 = vmatprep.subr.mxu0 0.0
    %v894 = vand.u32 %v73, 4294901760
    %v895 = vsub.f32 %v73, %v894
    %v896 = vand.u32 %v895, 4294901760
    %v897 = vsub.f32 %v895, %v896
    %v898 = vand.u32 %v897, 4294901760
    %899 = vmatpush1.msra.mxu0 %v898
    %900 = vmatprep.subr.mxu0 0.0
    %v901 = vand.u32 %v74, 4294901760
    %v902 = vsub.f32 %v74, %v901
    %v903 = vand.u32 %v902, 4294901760
    %v904 = vsub.f32 %v902, %v903
    %v905 = vand.u32 %v904, 4294901760
    %906 = vmatpush1.msra.mxu0 %v905
    %907 = vmatprep.subr.mxu0 0.0
    %v908 = vand.u32 %v75, 4294901760
    %v909 = vsub.f32 %v75, %v908
    %v910 = vand.u32 %v909, 4294901760
    %v911 = vsub.f32 %v909, %v910
    %v912 = vand.u32 %v911, 4294901760
    %913 = vmatpush1.msra.mxu0 %v912
    %914 = vmatprep.subr.mxu0 0.0
    %v915 = vand.u32 %v76, 4294901760
    %v916 = vsub.f32 %v76, %v915
    %v917 = vand.u32 %v916, 4294901760
    %v918 = vsub.f32 %v916, %v917
    %v919 = vand.u32 %v918, 4294901760
    %920 = vmatpush1.msra.mxu0 %v919
    %921 = vmatprep.subr.mxu0 0.0
    %922 = vmatpush1.msra.mxu0 0.0
    %923 = vmatprep.subr.mxu0 0.0
    %924 = vmatpush1.msra.mxu0 0.0
    %925 = vmatprep.subr.mxu0 0.0
    %926 = vmatpush1.msra.mxu0 0.0
    %927 = vmatprep.subr.mxu0 0.0
    %928 = vmatpush1.msra.mxu0 0.0
    %929 = vmatprep.subr.mxu0 0.0
    %930 = vmatpush1.msra.mxu0 0.0
    %931 = vmatprep.subr.mxu0 0.0
    %932 = vmatpush1.msra.mxu0 0.0
    %933 = vmatprep.subr.mxu0 0.0
    %934 = vmatpush1.msra.mxu0 0.0
    %935 = vmatprep.subr.mxu0 0.0
    %936 = vmatpush1.msra.mxu0 0.0
    %937 = vmatprep.subr.mxu0 0.0
    %938 = vmatpush1.msra.mxu0 0.0
    %939 = vmatprep.subr.mxu0 0.0
    %940 = vmatpush1.msra.mxu0 0.0
    %941 = vmatprep.subr.mxu0 0.0
    %942 = vmatpush1.msra.mxu0 0.0
    %943 = vmatprep.subr.mxu0 0.0
    %944 = vmatpush1.msra.mxu0 0.0
    %945 = vmatprep.subr.mxu0 0.0
    %946 = vmatpush1.msra.mxu0 0.0
    %947 = vmatprep.subr.mxu0 0.0
    %948 = vmatpush1.msra.mxu0 0.0
    %949 = vmatprep.subr.mxu0 0.0
    %950 = vmatpush1.msra.mxu0 0.0
    %951 = vmatprep.subr.mxu0 0.0
    %952 = vmatpush1.msra.mxu0 0.0
    %953 = vmatprep.mubr.f32.mxu0 0.0
    %v954 = vand.u32 %v60, 4294901760
    %955 = vmatmul.mubr.f32.gmra.mrb[0].mxu0 %v954
    %v956 = vpop.f32.mrb[0].mxu0
    %v957 = vadd.f32 %v806, %v956
    %v958 = vpop.f32.mrb[0].mxu0
    %959 = vdwg.mxu0
    %960 = vmatprep.subr.mxu0 0.0
    %v961 = vand.u32 %v61, 4294901760
    %v962 = vsub.f32 %v61, %v961
    %963 = vmatpush1.msra.mxu0 %v962
    %964 = vmatprep.subr.mxu0 0.0
    %v965 = vand.u32 %v62, 4294901760
    %v966 = vsub.f32 %v62, %v965
    %967 = vmatpush1.msra.mxu0 %v966
    %968 = vmatprep.subr.mxu0 0.0
    %v969 = vand.u32 %v63, 4294901760
    %v970 = vsub.f32 %v63, %v969
    %971 = vmatpush1.msra.mxu0 %v970
    %972 = vmatprep.subr.mxu0 0.0
    %v973 = vand.u32 %v64, 4294901760
    %v974 = vsub.f32 %v64, %v973
    %975 = vmatpush1.msra.mxu0 %v974
    %976 = vmatprep.subr.mxu0 0.0
    %v977 = vand.u32 %v65, 4294901760
    %v978 = vsub.f32 %v65, %v977
    %979 = vmatpush1.msra.mxu0 %v978
    %980 = vmatprep.subr.mxu0 0.0
    %v981 = vand.u32 %v66, 4294901760
    %v982 = vsub.f32 %v66, %v981
    %983 = vmatpush1.msra.mxu0 %v982
    %984 = vmatprep.subr.mxu0 0.0
    %v985 = vand.u32 %v67, 4294901760
    %v986 = vsub.f32 %v67, %v985
    %987 = vmatpush1.msra.mxu0 %v986
    %988 = vmatprep.subr.mxu0 0.0
    %v989 = vand.u32 %v68, 4294901760
    %v990 = vsub.f32 %v68, %v989
    %991 = vmatpush1.msra.mxu0 %v990
    %992 = vmatprep.subr.mxu0 0.0
    %v993 = vand.u32 %v69, 4294901760
    %v994 = vsub.f32 %v69, %v993
    %995 = vmatpush1.msra.mxu0 %v994
    %996 = vmatprep.subr.mxu0 0.0
    %v997 = vand.u32 %v70, 4294901760
    %v998 = vsub.f32 %v70, %v997
    %999 = vmatpush1.msra.mxu0 %v998
    %1000 = vmatprep.subr.mxu0 0.0
    %v1001 = vand.u32 %v71, 4294901760
    %v1002 = vsub.f32 %v71, %v1001
    %1003 = vmatpush1.msra.mxu0 %v1002
    %1004 = vmatprep.subr.mxu0 0.0
    %v1005 = vand.u32 %v72, 4294901760
    %v1006 = vsub.f32 %v72, %v1005
    %1007 = vmatpush1.msra.mxu0 %v1006
    %1008 = vmatprep.subr.mxu0 0.0
    %v1009 = vand.u32 %v73, 4294901760
    %v1010 = vsub.f32 %v73, %v1009
    %1011 = vmatpush1.msra.mxu0 %v1010
    %1012 = vmatprep.subr.mxu0 0.0
    %v1013 = vand.u32 %v74, 4294901760
    %v1014 = vsub.f32 %v74, %v1013
    %1015 = vmatpush1.msra.mxu0 %v1014
    %1016 = vmatprep.subr.mxu0 0.0
    %v1017 = vand.u32 %v75, 4294901760
    %v1018 = vsub.f32 %v75, %v1017
    %1019 = vmatpush1.msra.mxu0 %v1018
    %1020 = vmatprep.subr.mxu0 0.0
    %v1021 = vand.u32 %v76, 4294901760
    %v1022 = vsub.f32 %v76, %v1021
    %1023 = vmatpush1.msra.mxu0 %v1022
    %1024 = vmatprep.subr.mxu0 0.0
    %1025 = vmatpush1.msra.mxu0 0.0
    %1026 = vmatprep.subr.mxu0 0.0
    %1027 = vmatpush1.msra.mxu0 0.0
    %1028 = vmatprep.subr.mxu0 0.0
    %1029 = vmatpush1.msra.mxu0 0.0
    %1030 = vmatprep.subr.mxu0 0.0
    %1031 = vmatpush1.msra.mxu0 0.0
    %1032 = vmatprep.subr.mxu0 0.0
    %1033 = vmatpush1.msra.mxu0 0.0
    %1034 = vmatprep.subr.mxu0 0.0
    %1035 = vmatpush1.msra.mxu0 0.0
    %1036 = vmatprep.subr.mxu0 0.0
    %1037 = vmatpush1.msra.mxu0 0.0
    %1038 = vmatprep.subr.mxu0 0.0
    %1039 = vmatpush1.msra.mxu0 0.0
    %1040 = vmatprep.subr.mxu0 0.0
    %1041 = vmatpush1.msra.mxu0 0.0
    %1042 = vmatprep.subr.mxu0 0.0
    %1043 = vmatpush1.msra.mxu0 0.0
    %1044 = vmatprep.subr.mxu0 0.0
    %1045 = vmatpush1.msra.mxu0 0.0
    %1046 = vmatprep.subr.mxu0 0.0
    %1047 = vmatpush1.msra.mxu0 0.0
    %1048 = vmatprep.subr.mxu0 0.0
    %1049 = vmatpush1.msra.mxu0 0.0
    %1050 = vmatprep.subr.mxu0 0.0
    %1051 = vmatpush1.msra.mxu0 0.0
    %1052 = vmatprep.subr.mxu0 0.0
    %1053 = vmatpush1.msra.mxu0 0.0
    %1054 = vmatprep.subr.mxu0 0.0
    %1055 = vmatpush1.msra.mxu0 0.0
    %1056 = vmatprep.mubr.f32.mxu0 0.0
    %v1057 = vand.u32 %v60, 4294901760
    %v1058 = vsub.f32 %v60, %v1057
    %1059 = vmatmul.mubr.f32.gmra.mrb[0].mxu0 %v1058
    %v1060 = vpop.f32.mrb[0].mxu0
    %v1061 = vadd.f32 %v957, %v1060
    %v1062 = vpop.f32.mrb[0].mxu0
    %1063 = vdwg.mxu0
    %1064 = vmatprep.subr.mxu0 0.0
    %v1065 = vand.u32 %v61, 4294901760
    %1066 = vmatpush1.msra.mxu0 %v1065
    %1067 = vmatprep.subr.mxu0 0.0
    %v1068 = vand.u32 %v62, 4294901760
    %1069 = vmatpush1.msra.mxu0 %v1068
    %1070 = vmatprep.subr.mxu0 0.0
    %v1071 = vand.u32 %v63, 4294901760
    %1072 = vmatpush1.msra.mxu0 %v1071
    %1073 = vmatprep.subr.mxu0 0.0
    %v1074 = vand.u32 %v64, 4294901760
    %1075 = vmatpush1.msra.mxu0 %v1074
    %1076 = vmatprep.subr.mxu0 0.0
    %v1077 = vand.u32 %v65, 4294901760
    %1078 = vmatpush1.msra.mxu0 %v1077
    %1079 = vmatprep.subr.mxu0 0.0
    %v1080 = vand.u32 %v66, 4294901760
    %1081 = vmatpush1.msra.mxu0 %v1080
    %1082 = vmatprep.subr.mxu0 0.0
    %v1083 = vand.u32 %v67, 4294901760
    %1084 = vmatpush1.msra.mxu0 %v1083
    %1085 = vmatprep.subr.mxu0 0.0
    %v1086 = vand.u32 %v68, 4294901760
    %1087 = vmatpush1.msra.mxu0 %v1086
    %1088 = vmatprep.subr.mxu0 0.0
    %v1089 = vand.u32 %v69, 4294901760
    %1090 = vmatpush1.msra.mxu0 %v1089
    %1091 = vmatprep.subr.mxu0 0.0
    %v1092 = vand.u32 %v70, 4294901760
    %1093 = vmatpush1.msra.mxu0 %v1092
    %1094 = vmatprep.subr.mxu0 0.0
    %v1095 = vand.u32 %v71, 4294901760
    %1096 = vmatpush1.msra.mxu0 %v1095
    %1097 = vmatprep.subr.mxu0 0.0
    %v1098 = vand.u32 %v72, 4294901760
    %1099 = vmatpush1.msra.mxu0 %v1098
    %1100 = vmatprep.subr.mxu0 0.0
    %v1101 = vand.u32 %v73, 4294901760
    %1102 = vmatpush1.msra.mxu0 %v1101
    %1103 = vmatprep.subr.mxu0 0.0
    %v1104 = vand.u32 %v74, 4294901760
    %1105 = vmatpush1.msra.mxu0 %v1104
    %1106 = vmatprep.subr.mxu0 0.0
    %v1107 = vand.u32 %v75, 4294901760
    %1108 = vmatpush1.msra.mxu0 %v1107
    %1109 = vmatprep.subr.mxu0 0.0
    %v1110 = vand.u32 %v76, 4294901760
    %1111 = vmatpush1.msra.mxu0 %v1110
    %1112 = vmatprep.subr.mxu0 0.0
    %1113 = vmatpush1.msra.mxu0 0.0
    %1114 = vmatprep.subr.mxu0 0.0
    %1115 = vmatpush1.msra.mxu0 0.0
    %1116 = vmatprep.subr.mxu0 0.0
    %1117 = vmatpush1.msra.mxu0 0.0
    %1118 = vmatprep.subr.mxu0 0.0
    %1119 = vmatpush1.msra.mxu0 0.0
    %1120 = vmatprep.subr.mxu0 0.0
    %1121 = vmatpush1.msra.mxu0 0.0
    %1122 = vmatprep.subr.mxu0 0.0
    %1123 = vmatpush1.msra.mxu0 0.0
    %1124 = vmatprep.subr.mxu0 0.0
    %1125 = vmatpush1.msra.mxu0 0.0
    %1126 = vmatprep.subr.mxu0 0.0
    %1127 = vmatpush1.msra.mxu0 0.0
    %1128 = vmatprep.subr.mxu0 0.0
    %1129 = vmatpush1.msra.mxu0 0.0
    %1130 = vmatprep.subr.mxu0 0.0
    %1131 = vmatpush1.msra.mxu0 0.0
    %1132 = vmatprep.subr.mxu0 0.0
    %1133 = vmatpush1.msra.mxu0 0.0
    %1134 = vmatprep.subr.mxu0 0.0
    %1135 = vmatpush1.msra.mxu0 0.0
    %1136 = vmatprep.subr.mxu0 0.0
    %1137 = vmatpush1.msra.mxu0 0.0
    %1138 = vmatprep.subr.mxu0 0.0
    %1139 = vmatpush1.msra.mxu0 0.0
    %1140 = vmatprep.subr.mxu0 0.0
    %1141 = vmatpush1.msra.mxu0 0.0
    %1142 = vmatprep.subr.mxu0 0.0
    %1143 = vmatpush1.msra.mxu0 0.0
    %1144 = vmatprep.mubr.f32.mxu0 0.0
    %v1145 = vand.u32 %v60, 4294901760
    %v1146 = vsub.f32 %v60, %v1145
    %v1147 = vand.u32 %v1146, 4294901760
    %1148 = vmatmul.mubr.f32.gmra.mrb[0].mxu0 %v1147
    %v1149 = vpop.f32.mrb[0].mxu0
    %v1150 = vadd.f32 %v1061, %v1149
    %v1151 = vpop.f32.mrb[0].mxu0
    %1152 = vdwg.mxu0
    %1153 = vmatprep.subr.mxu0 0.0
    %v1154 = vand.u32 %v61, 4294901760
    %v1155 = vsub.f32 %v61, %v1154
    %v1156 = vand.u32 %v1155, 4294901760
    %1157 = vmatpush1.msra.mxu0 %v1156
    %1158 = vmatprep.subr.mxu0 0.0
    %v1159 = vand.u32 %v62, 4294901760
    %v1160 = vsub.f32 %v62, %v1159
    %v1161 = vand.u32 %v1160, 4294901760
    %1162 = vmatpush1.msra.mxu0 %v1161
    %1163 = vmatprep.subr.mxu0 0.0
    %v1164 = vand.u32 %v63, 4294901760
    %v1165 = vsub.f32 %v63, %v1164
    %v1166 = vand.u32 %v1165, 4294901760
    %1167 = vmatpush1.msra.mxu0 %v1166
    %1168 = vmatprep.subr.mxu0 0.0
    %v1169 = vand.u32 %v64, 4294901760
    %v1170 = vsub.f32 %v64, %v1169
    %v1171 = vand.u32 %v1170, 4294901760
    %1172 = vmatpush1.msra.mxu0 %v1171
    %1173 = vmatprep.subr.mxu0 0.0
    %v1174 = vand.u32 %v65, 4294901760
    %v1175 = vsub.f32 %v65, %v1174
    %v1176 = vand.u32 %v1175, 4294901760
    %1177 = vmatpush1.msra.mxu0 %v1176
    %1178 = vmatprep.subr.mxu0 0.0
    %v1179 = vand.u32 %v66, 4294901760
    %v1180 = vsub.f32 %v66, %v1179
    %v1181 = vand.u32 %v1180, 4294901760
    %1182 = vmatpush1.msra.mxu0 %v1181
    %1183 = vmatprep.subr.mxu0 0.0
    %v1184 = vand.u32 %v67, 4294901760
    %v1185 = vsub.f32 %v67, %v1184
    %v1186 = vand.u32 %v1185, 4294901760
    %1187 = vmatpush1.msra.mxu0 %v1186
    %1188 = vmatprep.subr.mxu0 0.0
    %v1189 = vand.u32 %v68, 4294901760
    %v1190 = vsub.f32 %v68, %v1189
    %v1191 = vand.u32 %v1190, 4294901760
    %1192 = vmatpush1.msra.mxu0 %v1191
    %1193 = vmatprep.subr.mxu0 0.0
    %v1194 = vand.u32 %v69, 4294901760
    %v1195 = vsub.f32 %v69, %v1194
    %v1196 = vand.u32 %v1195, 4294901760
    %1197 = vmatpush1.msra.mxu0 %v1196
    %1198 = vmatprep.subr.mxu0 0.0
    %v1199 = vand.u32 %v70, 4294901760
    %v1200 = vsub.f32 %v70, %v1199
    %v1201 = vand.u32 %v1200, 4294901760
    %1202 = vmatpush1.msra.mxu0 %v1201
    %1203 = vmatprep.subr.mxu0 0.0
    %v1204 = vand.u32 %v71, 4294901760
    %v1205 = vsub.f32 %v71, %v1204
    %v1206 = vand.u32 %v1205, 4294901760
    %1207 = vmatpush1.msra.mxu0 %v1206
    %1208 = vmatprep.subr.mxu0 0.0
    %v1209 = vand.u32 %v72, 4294901760
    %v1210 = vsub.f32 %v72, %v1209
    %v1211 = vand.u32 %v1210, 4294901760
    %1212 = vmatpush1.msra.mxu0 %v1211
    %1213 = vmatprep.subr.mxu0 0.0
    %v1214 = vand.u32 %v73, 4294901760
    %v1215 = vsub.f32 %v73, %v1214
    %v1216 = vand.u32 %v1215, 4294901760
    %1217 = vmatpush1.msra.mxu0 %v1216
    %1218 = vmatprep.subr.mxu0 0.0
    %v1219 = vand.u32 %v74, 4294901760
    %v1220 = vsub.f32 %v74, %v1219
    %v1221 = vand.u32 %v1220, 4294901760
    %1222 = vmatpush1.msra.mxu0 %v1221
    %1223 = vmatprep.subr.mxu0 0.0
    %v1224 = vand.u32 %v75, 4294901760
    %v1225 = vsub.f32 %v75, %v1224
    %v1226 = vand.u32 %v1225, 4294901760
    %1227 = vmatpush1.msra.mxu0 %v1226
    %1228 = vmatprep.subr.mxu0 0.0
    %v1229 = vand.u32 %v76, 4294901760
    %v1230 = vsub.f32 %v76, %v1229
    %v1231 = vand.u32 %v1230, 4294901760
    %1232 = vmatpush1.msra.mxu0 %v1231
    %1233 = vmatprep.subr.mxu0 0.0
    %1234 = vmatpush1.msra.mxu0 0.0
    %1235 = vmatprep.subr.mxu0 0.0
    %1236 = vmatpush1.msra.mxu0 0.0
    %1237 = vmatprep.subr.mxu0 0.0
    %1238 = vmatpush1.msra.mxu0 0.0
    %1239 = vmatprep.subr.mxu0 0.0
    %1240 = vmatpush1.msra.mxu0 0.0
    %1241 = vmatprep.subr.mxu0 0.0
    %1242 = vmatpush1.msra.mxu0 0.0
    %1243 = vmatprep.subr.mxu0 0.0
    %1244 = vmatpush1.msra.mxu0 0.0
    %1245 = vmatprep.subr.mxu0 0.0
    %1246 = vmatpush1.msra.mxu0 0.0
    %1247 = vmatprep.subr.mxu0 0.0
    %1248 = vmatpush1.msra.mxu0 0.0
    %1249 = vmatprep.subr.mxu0 0.0
    %1250 = vmatpush1.msra.mxu0 0.0
    %1251 = vmatprep.subr.mxu0 0.0
    %1252 = vmatpush1.msra.mxu0 0.0
    %1253 = vmatprep.subr.mxu0 0.0
    %1254 = vmatpush1.msra.mxu0 0.0
    %1255 = vmatprep.subr.mxu0 0.0
    %1256 = vmatpush1.msra.mxu0 0.0
    %1257 = vmatprep.subr.mxu0 0.0
    %1258 = vmatpush1.msra.mxu0 0.0
    %1259 = vmatprep.subr.mxu0 0.0
    %1260 = vmatpush1.msra.mxu0 0.0
    %1261 = vmatprep.subr.mxu0 0.0
    %1262 = vmatpush1.msra.mxu0 0.0
    %1263 = vmatprep.subr.mxu0 0.0
    %1264 = vmatpush1.msra.mxu0 0.0
    %1265 = vmatprep.mubr.f32.mxu0 0.0
    %v1266 = vand.u32 %v60, 4294901760
    %1267 = vmatmul.mubr.f32.gmra.mrb[0].mxu0 %v1266
    %v1268 = vpop.f32.mrb[0].mxu0
    %v1269 = vadd.f32 %v1150, %v1268
    %v1270 = vpop.f32.mrb[0].mxu0
    %1271 = vdwg.mxu0
    %1272 = vmatprep.subr.mxu0 0.0
    %v1273 = vand.u32 %v61, 4294901760
    %1274 = vmatpush1.msra.mxu0 %v1273
    %1275 = vmatprep.subr.mxu0 0.0
    %v1276 = vand.u32 %v62, 4294901760
    %1277 = vmatpush1.msra.mxu0 %v1276
    %1278 = vmatprep.subr.mxu0 0.0
    %v1279 = vand.u32 %v63, 4294901760
    %1280 = vmatpush1.msra.mxu0 %v1279
    %1281 = vmatprep.subr.mxu0 0.0
    %v1282 = vand.u32 %v64, 4294901760
    %1283 = vmatpush1.msra.mxu0 %v1282
    %1284 = vmatprep.subr.mxu0 0.0
    %v1285 = vand.u32 %v65, 4294901760
    %1286 = vmatpush1.msra.mxu0 %v1285
    %1287 = vmatprep.subr.mxu0 0.0
    %v1288 = vand.u32 %v66, 4294901760
    %1289 = vmatpush1.msra.mxu0 %v1288
    %1290 = vmatprep.subr.mxu0 0.0
    %v1291 = vand.u32 %v67, 4294901760
    %1292 = vmatpush1.msra.mxu0 %v1291
    %1293 = vmatprep.subr.mxu0 0.0
    %v1294 = vand.u32 %v68, 4294901760
    %1295 = vmatpush1.msra.mxu0 %v1294
    %1296 = vmatprep.subr.mxu0 0.0
    %v1297 = vand.u32 %v69, 4294901760
    %1298 = vmatpush1.msra.mxu0 %v1297
    %1299 = vmatprep.subr.mxu0 0.0
    %v1300 = vand.u32 %v70, 4294901760
    %1301 = vmatpush1.msra.mxu0 %v1300
    %1302 = vmatprep.subr.mxu0 0.0
    %v1303 = vand.u32 %v71, 4294901760
    %1304 = vmatpush1.msra.mxu0 %v1303
    %1305 = vmatprep.subr.mxu0 0.0
    %v1306 = vand.u32 %v72, 4294901760
    %1307 = vmatpush1.msra.mxu0 %v1306
    %1308 = vmatprep.subr.mxu0 0.0
    %v1309 = vand.u32 %v73, 4294901760
    %1310 = vmatpush1.msra.mxu0 %v1309
    %1311 = vmatprep.subr.mxu0 0.0
    %v1312 = vand.u32 %v74, 4294901760
    %1313 = vmatpush1.msra.mxu0 %v1312
    %1314 = vmatprep.subr.mxu0 0.0
    %v1315 = vand.u32 %v75, 4294901760
    %1316 = vmatpush1.msra.mxu0 %v1315
    %1317 = vmatprep.subr.mxu0 0.0
    %v1318 = vand.u32 %v76, 4294901760
    %1319 = vmatpush1.msra.mxu0 %v1318
    %1320 = vmatprep.subr.mxu0 0.0
    %1321 = vmatpush1.msra.mxu0 0.0
    %1322 = vmatprep.subr.mxu0 0.0
    %1323 = vmatpush1.msra.mxu0 0.0
    %1324 = vmatprep.subr.mxu0 0.0
    %1325 = vmatpush1.msra.mxu0 0.0
    %1326 = vmatprep.subr.mxu0 0.0
    %1327 = vmatpush1.msra.mxu0 0.0
    %1328 = vmatprep.subr.mxu0 0.0
    %1329 = vmatpush1.msra.mxu0 0.0
    %1330 = vmatprep.subr.mxu0 0.0
    %1331 = vmatpush1.msra.mxu0 0.0
    %1332 = vmatprep.subr.mxu0 0.0
    %1333 = vmatpush1.msra.mxu0 0.0
    %1334 = vmatprep.subr.mxu0 0.0
    %1335 = vmatpush1.msra.mxu0 0.0
    %1336 = vmatprep.subr.mxu0 0.0
    %1337 = vmatpush1.msra.mxu0 0.0
    %1338 = vmatprep.subr.mxu0 0.0
    %1339 = vmatpush1.msra.mxu0 0.0
    %1340 = vmatprep.subr.mxu0 0.0
    %1341 = vmatpush1.msra.mxu0 0.0
    %1342 = vmatprep.subr.mxu0 0.0
    %1343 = vmatpush1.msra.mxu0 0.0
    %1344 = vmatprep.subr.mxu0 0.0
    %1345 = vmatpush1.msra.mxu0 0.0
    %1346 = vmatprep.subr.mxu0 0.0
    %1347 = vmatpush1.msra.mxu0 0.0
    %1348 = vmatprep.subr.mxu0 0.0
    %1349 = vmatpush1.msra.mxu0 0.0
    %1350 = vmatprep.subr.mxu0 0.0
    %1351 = vmatpush1.msra.mxu0 0.0
    %1352 = vmatprep.mubr.f32.mxu0 0.0
    %v1353 = vand.u32 %v60, 4294901760
    %1354 = vmatmul.mubr.f32.gmra.mrb[0].mxu0 %v1353
    %v1355 = vpop.f32.mrb[0].mxu0
    %v1356 = vadd.f32 %v1269, %v1355
    %v1357 = vpop.f32.mrb[0].mxu0
    %1358 = vdwg.mxu0
    %v1359 = vmul.f32 %v715, 0.0625
    %v1360 = vmul.f32 %v1356, 0.0625
    %v1361 = vmul.f32 %v1359, %v1359
    %v1362 = vsub.f32 %v1360, %v1361
    %v1363 = vmax.f32 %v1362, 0.0
    %v1364 = vld [vmem:[%s1] sm:$0x1]
    %v1365 = vadd.f32 %v1363, 1e-05
    %v1366 = vrsqrt.pop %v1365
    %v1367 = vmul.f32 %v1364, %v1366
    %v1368 = vld [vmem:[%s2] sm:$0x1]
    %v1369 = vmul.f32 %v1359, %v1367
    %v1370 = vsub.f32 %v1368, %v1369
    %v1372 = vlaneseq
    %v1373 = vshrl.u32 %v1372, 7
    %v1374 = vsub.s32 0, %v1373
    %v1375 = vrot.slane %v1367, %v1374
    %v1377 = vmul.f32 %v44, %v1375
    %v1379 = vlaneseq
    %v1380 = vshrl.u32 %v1379, 7
    %v1381 = vsub.s32 0, %v1380
    %v1382 = vrot.slane %v1370, %v1381
    %v1384 = vadd.f32 %v1377, %v1382
    %1385 = vst [vmem:[#allocation7] sm:$0xf] %v1384
    // Predicated region
    $region26: #{tpu_custom_call.1} parent=1 // pred_check
      _
    $region27: #{tpu_custom_call.1} parent=1 // pred_check_branch
      %1387 = sbr.rel (0) target = $region29
    $region28: #{tpu_custom_call.1} parent=1 // pred_region
      %s1389 = ssub.s32 64, 64
      %1390 = vsyncadd [#allocation4], %s1389
      %s1392 = sshll.u32 [#allocation7], 4
      %s1393 = int_to_ptr.vmem [resolvable:$true] %s1392
      %1395 = dma.vmem_to_hbm [thread:$0]  %s1393, 64, %s4, [#allocation4]
    $region29: #{tpu_custom_call.1} parent=1 // pred_fallthru
      _
    // Predicated region
    $region30: #{tpu_custom_call.1} parent=1 // pred_check
      _
    $region31: #{tpu_custom_call.1} parent=1 // pred_check_branch
      %1397 = sbr.rel (0) target = $region33
    $region32: #{tpu_custom_call.1} parent=1 // pred_region
      %1398 = dma.done [#allocation4], 64
    $region33: #{tpu_custom_call.1} parent=1 // pred_fallthru
      _
    %1399 = vsyncpa [#allocation3], 1
    %1400 = vsyncpa [#allocation6], 1
    %1401 = vsyncpa [#allocation4], 1

</llo_original>
